<compile_context>
chip_gen: v7x
topology: tpu7x:2x2x1
jax: 0.10.0
libtpu: 0.0.40
codegen_flags: <defaults>
</compile_context>

<pallas_src>
import functools

import numpy as np

import jax
import jax.numpy as jnp
from jax.experimental import pallas as pl
from jax.experimental.pallas import tpu as pltpu


# ---------------------------------------------------------------------------
# Fused Pallas kernel: whole UNet forward + argmax in one invocation
# ---------------------------------------------------------------------------


def _ttuseg_kernel(
    # ---- inputs (VMEM) ----
    x_ref,        # (CIN, HW)            f32   channels-first flat input
    mf_ref,       # (2, HW)              f32   full-res col masks [dw=-1; dw=+1]
    mh_ref,       # (2, HW2)             f32   half-res col masks
    spool_ref,    # (HW, HW2)            f32   one-hot 2x2-pool compaction
    sup_ref,      # (HW2, HW)            f32   one-hot nearest-x2 duplication
    w1_ref,       # (C1, 9*CIN)          bf16
    b1_ref,       # (C1, 1)              f32
    w2_ref,       # (C2, 9*C1)           bf16
    b2_ref,       # (C2, 1)              f32
    w3_ref,       # (C1, 9*(C2+C1))      bf16  fused up++skip conv3 weight
    b3_ref,       # (C1, 1)              f32
    w4_ref,       # (NCLS, C1)           f32   1x1 classifier
    b4_ref,       # (NCLS, 1)            f32
    # ---- output (VMEM) ----
    o_ref,        # (1, HW) int32        lane-dense class map
    # ---- VMEM scratch ----
    xpad_ref,     # (CIN, HW + 2*(W+1))   f32  row-padded input
    e1pad_ref,    # (C1,  HW + 2*(W+1))   f32  row-padded conv1 output (skip)
    ppad_ref,     # (C1,  HW2 + 2*(W2+1)) f32  row-padded pooled map
    uppad_ref,    # (C2,  HW + 2*(W+1))   f32  row-padded upsampled bottleneck
    col1_ref,     # (9*CIN,      HW)      f32  im2col columns, conv1
    col2_ref,     # (9*C1,       HW2)     f32  im2col columns, conv2
    col3_ref,     # (9*(C2+C1),  HW)      f32  im2col columns, conv3 (fused)
    *,
    H, W, CIN, C1, C2, NCLS,
):
    H2, W2 = H // 2, W // 2
    HW, HW2 = H * W, H2 * W2
    PADF, PADH = W + 1, W2 + 1
    f32, bf16 = jnp.float32, jnp.bfloat16

    def zero_halo(pad_ref, pad, hw):
        """Zero only the 1-row (+-1 lane) halo; the interior is written next."""
        c = pad_ref.shape[0]
        z = jnp.zeros((c, pad), pad_ref.dtype)
        pad_ref[:, 0:pad] = z
        pad_ref[:, pad + hw:pad + hw + pad] = z

    def im2col(pad_ref, col_ref, c, hw, w_row, pad, m_ref, row_off, row_stride):
        """9 shifted contiguous slices of the row-padded (c, .) activation into
        the (K, hw) column scratch; rows ordered (tap, channel). Vertical
        out-of-image reads hit the zero halo; horizontal row-wrap reads are
        killed by the precomputed left/right column masks."""
        for kh in range(3):
            dh = kh - 1
            for kw in range(3):
                dw = kw - 1
                t = kh * 3 + kw
                start = pad + dh * w_row + dw
                patch = pad_ref[:, start:start + hw]          # (c, hw) f32
                if dw == -1:
                    patch = patch * m_ref[0:1, :]
                elif dw == 1:
                    patch = patch * m_ref[1:2, :]
                r0 = row_off + t * row_stride
                col_ref[r0:r0 + c, :] = patch

    # ---- stage 0: row-padded channels-first input -----------------------------
    zero_halo(xpad_ref, PADF, HW)
    xpad_ref[:, PADF:PADF + HW] = x_ref[...]

    # ---- conv1 3x3 (CIN->C1) + ReLU: im2col + single bf16 MXU matmul ----------
    im2col(xpad_ref, col1_ref, CIN, HW, W, PADF, mf_ref, 0, CIN)
    e1 = jnp.dot(w1_ref[...], col1_ref[...].astype(bf16),
                 preferred_element_type=f32)
    e1 = jnp.maximum(e1 + b1_ref[...], 0.0)                   # (C1, HW) f32

    # full-res skip copy stays resident in VMEM (feeds pool + conv3)
    zero_halo(e1pad_ref, PADF, HW)
    e1pad_ref[:, PADF:PADF + HW] = e1

    # ---- 2x2 max-pool ---------------------------------------------------------
    # Window max via 3 VPU maxes of shifted contiguous loads (halo is zero and
    # e1 >= 0, and only even (i, j) anchors are kept), then ONE precomputed
    # one-hot compaction matmul selects the (H/2, W/2) anchors.
    m = jnp.maximum(e1, e1pad_ref[:, PADF + 1:PADF + 1 + HW])
    m = jnp.maximum(m, e1pad_ref[:, PADF + W:PADF + W + HW])
    m = jnp.maximum(m, e1pad_ref[:, PADF + W + 1:PADF + W + 1 + HW])
    pooled = jnp.dot(m, spool_ref[...], preferred_element_type=f32)   # (C1, HW2)

    zero_halo(ppad_ref, PADH, HW2)
    ppad_ref[:, PADH:PADH + HW2] = pooled

    # ---- conv2 3x3 (C1->C2) + ReLU (bottleneck, half resolution) --------------
    im2col(ppad_ref, col2_ref, C1, HW2, W2, PADH, mh_ref, 0, C1)
    bneck = jnp.dot(w2_ref[...], col2_ref[...].astype(bf16),
                    preferred_element_type=f32)
    bneck = jnp.maximum(bneck + b2_ref[...], 0.0)             # (C2, HW2)

    # ---- nearest-neighbour x2 upsample: precomputed one-hot duplication -------
    # TODO(synk): at real image sizes replace with a lane-interleave /
    # row-duplicating store scheme; the (HW2, HW) selection matrix is O(HW^2).
    up = jnp.dot(bneck, sup_ref[...], preferred_element_type=f32)     # (C2, HW)
    zero_halo(uppad_ref, PADF, HW)
    uppad_ref[:, PADF:PADF + HW] = up

    # ---- conv3 3x3 (C2 up ++ C1 skip -> C1) + ReLU: ONE fused K=216 matmul ----
    CC = C2 + C1
    im2col(uppad_ref, col3_ref, C2, HW, W, PADF, mf_ref, 0, CC)   # up channels
    im2col(e1pad_ref, col3_ref, C1, HW, W, PADF, mf_ref, C2, CC)  # skip channels
    d = jnp.dot(w3_ref[...], col3_ref[...].astype(bf16),
                preferred_element_type=f32)
    d = jnp.maximum(d + b3_ref[...], 0.0)                     # (C1, HW)

    # ---- 1x1 classifier conv fused with argmax, lane-dense output -------------
    logits = jnp.dot(w4_ref[...], d, preferred_element_type=f32) + b4_ref[...]
    best_val = logits[0:1, :]
    best_idx = jnp.zeros((1, HW), jnp.int32)
    for k in range(1, NCLS):
        row = logits[k:k + 1, :]
        better = row > best_val            # strict '>' = torch.argmax tie-break
        best_idx = jnp.where(better, k, best_idx)
        best_val = jnp.where(better, row, best_val)
    o_ref[...] = best_idx                                     # lane-dense int32 store


# ---------------------------------------------------------------------------
# Wrappers
# ---------------------------------------------------------------------------

_VMEM = pl.BlockSpec(memory_space=pltpu.MemorySpace.VMEM)


def _shape_constants(H, W):
    """Shape-only constants (column masks + one-hot pool/upsample matrices),
    built host-side so the kernel never runs iota / div / mod on the VPU."""
    H2, W2 = H // 2, W // 2
    HW, HW2 = H * W, H2 * W2

    j = np.arange(HW) % W
    mf = np.stack([(j != 0), (j != W - 1)]).astype(np.float32)        # (2, HW)
    jh = np.arange(HW2) % W2
    mh = np.stack([(jh != 0), (jh != W2 - 1)]).astype(np.float32)     # (2, HW2)

    # 2x2-pool compaction: output q=(pi,pj) selects full-res anchor (2pi, 2pj)
    spool = np.zeros((HW, HW2), np.float32)
    q = np.arange(HW2)
    pi, pj = q // W2, q % W2
    spool[(2 * pi) * W + 2 * pj, q] = 1.0

    # nearest-x2 upsample: output p=(i,j) selects bottleneck pixel (i//2, j//2)
    sup = np.zeros((HW2, HW), np.float32)
    p = np.arange(HW)
    i, jj = p // W, p % W
    sup[(i // 2) * W2 + (jj // 2), p] = 1.0
    return mf, mh, spool, sup


def _ttuseg_pallas(prepped, x):
    H, W, CIN = x.shape
    C1 = prepped["w1t"].shape[0]
    C2 = prepped["w2t"].shape[0]
    NCLS = prepped["w4t"].shape[0]
    assert H % 2 == 0 and W % 2 == 0, "synthetic unet assumes even H, W"
    H2, W2 = H // 2, W // 2
    HW, HW2 = H * W, H2 * W2
    PADF, PADH = W + 1, W2 + 1

    mf, mh, spool, sup = _shape_constants(H, W)
    xcf = x.reshape(HW, CIN).T        # layout-only glue: HWC -> (CIN, HW)

    kernel = functools.partial(
        _ttuseg_kernel, H=H, W=W, CIN=CIN, C1=C1, C2=C2, NCLS=NCLS)

    return pl.pallas_call(
        kernel,
        out_shape=jax.ShapeDtypeStruct((1, HW), jnp.int32),
        in_specs=[_VMEM] * 13,
        out_specs=_VMEM,
        scratch_shapes=[
            pltpu.VMEM((CIN, HW + 2 * PADF), jnp.float32),     # padded input
            pltpu.VMEM((C1, HW + 2 * PADF), jnp.float32),      # padded e1 (skip)
            pltpu.VMEM((C1, HW2 + 2 * PADH), jnp.float32),     # padded pooled map
            pltpu.VMEM((C2, HW + 2 * PADF), jnp.float32),      # padded upsampled
            pltpu.VMEM((9 * CIN, HW), jnp.float32),            # im2col conv1
            pltpu.VMEM((9 * C1, HW2), jnp.float32),            # im2col conv2
            pltpu.VMEM((9 * (C2 + C1), HW), jnp.float32),      # im2col conv3 (fused)
        ],
        # No grid: at 16x16 the whole forward (~340 KiB of VMEM scratch) fits
        # comfortably; a grid would only add per-step overhead on v5e/v6e.
        # TODO(synk): for real image sizes, tile H into halo-overlapped row
        # blocks (BlockSpec grid, dimension_semantics=("parallel",)) sized
        # against v7x's 64 MiB VMEM so its second TensorCore is used, and raise
        # vmem_limit_bytes via pltpu.CompilerParams.
    )(xcf, jnp.asarray(mf), jnp.asarray(mh), jnp.asarray(spool), jnp.asarray(sup),
      prepped["w1t"], prepped["b1"], prepped["w2t"], prepped["b2"],
      prepped["w3t"], prepped["b3"], prepped["w4t"], prepped["b4"])


@jax.jit
def ttuseg_forward(prepped, x):
    """TTUSeg.forward: (H, W, Cin) float32 -> (H, W, 1) uint8 class map."""
    H, W, _ = x.shape
    cls_flat = _ttuseg_pallas(prepped, x)                # (1, H*W) int32, ONE kernel
    # uint8 cast + (H, W, 1) reshape: free XLA glue on ~1 KiB.
    return cls_flat.reshape(H, W, 1).astype(jnp.uint8)


# ---------------------------------------------------------------------------
# Synthetic tiny UNet parameters
# ---------------------------------------------------------------------------


def init_params(key, cin=4, c1=8, c2=16, ncls=3):
    """Deterministic synthetic-unet weights (layout: K, K, Cin, Cout)."""
    ks = jax.random.split(key, 8)
    return {
        "w1": jax.random.normal(ks[0], (3, 3, cin, c1), jnp.float32) * 0.1,
        "b1": jax.random.normal(ks[1], (c1,), jnp.float32) * 0.01,
        "w2": jax.random.normal(ks[2], (3, 3, c1, c2), jnp.float32) * 0.1,
        "b2": jax.random.normal(ks[3], (c2,), jnp.float32) * 0.01,
        "w3": jax.random.normal(ks[4], (3, 3, c2 + c1, c1), jnp.float32) * 0.1,
        "b3": jax.random.normal(ks[5], (c1,), jnp.float32) * 0.01,
        "w4": jax.random.normal(ks[6], (1, 1, c1, ncls), jnp.float32) * 0.1,
        "b4": jax.random.normal(ks[7], (ncls,), jnp.float32) * 0.01,
    }


def prepare_params(params):
    """One-time (outside the hot path) weight repack for the fused kernel:
    (Cout, K) im2col-transposed conv weights in bf16 (MXU-native operands on
    v5e/v6e/v7x), conv3's up/skip halves fused into one K=216 weight, the 1x1
    classifier kept in f32 (argmax head), biases as (C, 1) lane-broadcast."""
    cin, c1 = params["w1"].shape[2], params["w1"].shape[3]
    c2 = params["w2"].shape[3]
    ncls = params["w4"].shape[3]
    bf16 = jnp.bfloat16
    return {
        "w1t": params["w1"].reshape(9 * cin, c1).T.astype(bf16),          # (c1, 9cin)
        "b1": params["b1"].reshape(c1, 1),
        "w2t": params["w2"].reshape(9 * c1, c2).T.astype(bf16),           # (c2, 9c1)
        "b2": params["b2"].reshape(c2, 1),
        "w3t": params["w3"].reshape(9 * (c2 + c1), c1).T.astype(bf16),    # (c1, 216)
        "b3": params["b3"].reshape(c1, 1),
        "w4t": params["w4"].reshape(c1, ncls).T,                          # (ncls, c1) f32
        "b4": params["b4"].reshape(ncls, 1),
    }


# ---------------------------------------------------------------------------
# Pure-XLA reference (same synthetic unet) for a sanity check
# ---------------------------------------------------------------------------


def _ref_forward(params, x):
    def conv(h, w, b):
        y = jax.lax.conv_general_dilated(
            h, w, window_strides=(1, 1), padding="SAME",
            dimension_numbers=("NHWC", "HWIO", "NHWC"),
            precision=jax.lax.Precision.HIGHEST)
        return y + b

    h = x[None]                                                    # (1, H, W, Cin)
    e1 = jax.nn.relu(conv(h, params["w1"], params["b1"]))
    p1 = jax.lax.reduce_window(e1, -jnp.inf, jax.lax.max,
                               (1, 2, 2, 1), (1, 2, 2, 1), "VALID")
    bt = jax.nn.relu(conv(p1, params["w2"], params["b2"]))
    up = jnp.repeat(jnp.repeat(bt, 2, axis=1), 2, axis=2)
    cat = jnp.concatenate([up, e1], axis=-1)
    d = jax.nn.relu(conv(cat, params["w3"], params["b3"]))
    logits = conv(d, params["w4"], params["b4"])
    cls = jnp.argmax(logits, axis=-1)[0]                           # (H, W)
    return cls[..., None].astype(jnp.uint8)


# ---------------------------------------------------------------------------
# Main
# ---------------------------------------------------------------------------

if __name__ == "__main__":
    key = jax.random.PRNGKey(0)
    kx, kp = jax.random.split(key)

    H, W, CIN = 16, 16, 4
    x = jax.random.normal(kx, (H, W, CIN), jnp.float32)
    params = init_params(kp, cin=CIN, c1=8, c2=16, ncls=3)
    prepped = prepare_params(params)

    out = jax.block_until_ready(ttuseg_forward(prepped, x))

    assert out.shape == (H, W, 1), out.shape
    assert out.dtype == jnp.uint8, out.dtype
    assert int(out.max()) < 3                          # class ids within [0, ncls)

    # Sanity-check against the pure-XLA f32 reference of the same synthetic unet.
    # bf16 MXU operands in the kernel can flip argmax on near-tied logits, so we
    # require >= 97% pixel agreement rather than exact equality.
    ref = jax.block_until_ready(_ref_forward(params, x))
    agree = float(jnp.mean((out == ref).astype(jnp.float32)))
    assert agree >= 0.97, f"class-map agreement too low: {agree:.3f}"

    print("KERNEL_OK")
</pallas_src>

<mosaic_0001>
module attributes {stable_mosaic.version = 11 : i64} {
  func.func @_ttuseg_kernel(%arg0: memref<4x256xf32, #tpu.memory_space<vmem>>, %arg1: memref<2x256xf32, #tpu.memory_space<vmem>>, %arg2: memref<2x64xf32, #tpu.memory_space<vmem>>, %arg3: memref<256x64xf32, #tpu.memory_space<vmem>>, %arg4: memref<64x256xf32, #tpu.memory_space<vmem>>, %arg5: memref<8x36xbf16, #tpu.memory_space<vmem>>, %arg6: memref<8x1xf32, #tpu.memory_space<vmem>>, %arg7: memref<16x72xbf16, #tpu.memory_space<vmem>>, %arg8: memref<16x1xf32, #tpu.memory_space<vmem>>, %arg9: memref<8x216xbf16, #tpu.memory_space<vmem>>, %arg10: memref<8x1xf32, #tpu.memory_space<vmem>>, %arg11: memref<3x8xf32, #tpu.memory_space<vmem>>, %arg12: memref<3x1xf32, #tpu.memory_space<vmem>>, %arg13: memref<1x256xi32, #tpu.memory_space<vmem>>, %arg14: memref<4x290xf32, #tpu.memory_space<vmem>>, %arg15: memref<8x290xf32, #tpu.memory_space<vmem>>, %arg16: memref<8x82xf32, #tpu.memory_space<vmem>>, %arg17: memref<16x290xf32, #tpu.memory_space<vmem>>, %arg18: memref<36x256xf32, #tpu.memory_space<vmem>>, %arg19: memref<72x64xf32, #tpu.memory_space<vmem>>, %arg20: memref<216x256xf32, #tpu.memory_space<vmem>>) attributes {dimension_semantics = [], scalar_prefetch = 0 : i64, scratch_operands = 7 : i64, tpu.core_type = #tpu.core_type<tc>} {
    %cst = arith.constant 0.000000e+00 : f32
    %0 = vector.broadcast %cst : f32 to vector<4x17xf32>
    %c0 = arith.constant 0 : index
    %c0_0 = arith.constant 0 : index
    %1 = vector.load %arg14[%c0, %c0_0] : memref<4x290xf32, #tpu.memory_space<vmem>>, vector<4x17xf32>
    tpu.vector_store %arg14[%c0, %c0_0], %0 {strides = array<i32>} : memref<4x290xf32, #tpu.memory_space<vmem>>, vector<4x17xf32>,
    %c0_1 = arith.constant 0 : index
    %c273 = arith.constant 273 : index
    %2 = vector.load %arg14[%c0_1, %c273] : memref<4x290xf32, #tpu.memory_space<vmem>>, vector<4x17xf32>
    tpu.vector_store %arg14[%c0_1, %c273], %0 {strides = array<i32>} : memref<4x290xf32, #tpu.memory_space<vmem>>, vector<4x17xf32>,
    %c0_2 = arith.constant 0 : index
    %c0_3 = arith.constant 0 : index
    %3 = vector.load %arg0[%c0_2, %c0_3] : memref<4x256xf32, #tpu.memory_space<vmem>>, vector<4x256xf32>
    %c0_4 = arith.constant 0 : index
    %c17 = arith.constant 17 : index
    %4 = vector.load %arg14[%c0_4, %c17] : memref<4x290xf32, #tpu.memory_space<vmem>>, vector<4x256xf32>
    tpu.vector_store %arg14[%c0_4, %c17], %3 {strides = array<i32>} : memref<4x290xf32, #tpu.memory_space<vmem>>, vector<4x256xf32>,
    %c0_5 = arith.constant 0 : index
    %c0_6 = arith.constant 0 : index
    %5 = vector.load %arg14[%c0_5, %c0_6] : memref<4x290xf32, #tpu.memory_space<vmem>>, vector<4x256xf32>
    %c0_7 = arith.constant 0 : index
    %c0_8 = arith.constant 0 : index
    %6 = vector.load %arg1[%c0_7, %c0_8] : memref<2x256xf32, #tpu.memory_space<vmem>>, vector<1x256xf32>
    %7 = vector.broadcast %6 : vector<1x256xf32> to vector<4x256xf32>
    %8 = arith.mulf %5, %7 : vector<4x256xf32>
    %c0_9 = arith.constant 0 : index
    %c0_10 = arith.constant 0 : index
    %9 = vector.load %arg18[%c0_9, %c0_10] : memref<36x256xf32, #tpu.memory_space<vmem>>, vector<4x256xf32>
    tpu.vector_store %arg18[%c0_9, %c0_10], %8 {strides = array<i32>} : memref<36x256xf32, #tpu.memory_space<vmem>>, vector<4x256xf32>,
    %c0_11 = arith.constant 0 : index
    %c1 = arith.constant 1 : index
    %10 = vector.load %arg14[%c0_11, %c1] : memref<4x290xf32, #tpu.memory_space<vmem>>, vector<4x256xf32>
    %c4 = arith.constant 4 : index
    %c0_12 = arith.constant 0 : index
    %11 = vector.load %arg18[%c4, %c0_12] : memref<36x256xf32, #tpu.memory_space<vmem>>, vector<4x256xf32>
    tpu.vector_store %arg18[%c4, %c0_12], %10 {strides = array<i32>} : memref<36x256xf32, #tpu.memory_space<vmem>>, vector<4x256xf32>,
    %c0_13 = arith.constant 0 : index
    %c2 = arith.constant 2 : index
    %12 = vector.load %arg14[%c0_13, %c2] : memref<4x290xf32, #tpu.memory_space<vmem>>, vector<4x256xf32>
    %c1_14 = arith.constant 1 : index
    %c0_15 = arith.constant 0 : index
    %13 = vector.load %arg1[%c1_14, %c0_15] : memref<2x256xf32, #tpu.memory_space<vmem>>, vector<1x256xf32>
    %14 = vector.broadcast %13 : vector<1x256xf32> to vector<4x256xf32>
    %15 = arith.mulf %12, %14 : vector<4x256xf32>
    %c8 = arith.constant 8 : index
    %c0_16 = arith.constant 0 : index
    %16 = vector.load %arg18[%c8, %c0_16] : memref<36x256xf32, #tpu.memory_space<vmem>>, vector<4x256xf32>
    tpu.vector_store %arg18[%c8, %c0_16], %15 {strides = array<i32>} : memref<36x256xf32, #tpu.memory_space<vmem>>, vector<4x256xf32>,
    %c0_17 = arith.constant 0 : index
    %c16 = arith.constant 16 : index
    %17 = vector.load %arg14[%c0_17, %c16] : memref<4x290xf32, #tpu.memory_space<vmem>>, vector<4x256xf32>
    %c0_18 = arith.constant 0 : index
    %c0_19 = arith.constant 0 : index
    %18 = vector.load %arg1[%c0_18, %c0_19] : memref<2x256xf32, #tpu.memory_space<vmem>>, vector<1x256xf32>
    %19 = vector.broadcast %18 : vector<1x256xf32> to vector<4x256xf32>
    %20 = arith.mulf %17, %19 : vector<4x256xf32>
    %c12 = arith.constant 12 : index
    %c0_20 = arith.constant 0 : index
    %21 = vector.load %arg18[%c12, %c0_20] : memref<36x256xf32, #tpu.memory_space<vmem>>, vector<4x256xf32>
    tpu.vector_store %arg18[%c12, %c0_20], %20 {strides = array<i32>} : memref<36x256xf32, #tpu.memory_space<vmem>>, vector<4x256xf32>,
    %c0_21 = arith.constant 0 : index
    %c17_22 = arith.constant 17 : index
    %22 = vector.load %arg14[%c0_21, %c17_22] : memref<4x290xf32, #tpu.memory_space<vmem>>, vector<4x256xf32>
    %c16_23 = arith.constant 16 : index
    %c0_24 = arith.constant 0 : index
    %23 = vector.load %arg18[%c16_23, %c0_24] : memref<36x256xf32, #tpu.memory_space<vmem>>, vector<4x256xf32>
    tpu.vector_store %arg18[%c16_23, %c0_24], %22 {strides = array<i32>} : memref<36x256xf32, #tpu.memory_space<vmem>>, vector<4x256xf32>,
    %c0_25 = arith.constant 0 : index
    %c18 = arith.constant 18 : index
    %24 = vector.load %arg14[%c0_25, %c18] : memref<4x290xf32, #tpu.memory_space<vmem>>, vector<4x256xf32>
    %c1_26 = arith.constant 1 : index
    %c0_27 = arith.constant 0 : index
    %25 = vector.load %arg1[%c1_26, %c0_27] : memref<2x256xf32, #tpu.memory_space<vmem>>, vector<1x256xf32>
    %26 = vector.broadcast %25 : vector<1x256xf32> to vector<4x256xf32>
    %27 = arith.mulf %24, %26 : vector<4x256xf32>
    %c20 = arith.constant 20 : index
    %c0_28 = arith.constant 0 : index
    %28 = vector.load %arg18[%c20, %c0_28] : memref<36x256xf32, #tpu.memory_space<vmem>>, vector<4x256xf32>
    tpu.vector_store %arg18[%c20, %c0_28], %27 {strides = array<i32>} : memref<36x256xf32, #tpu.memory_space<vmem>>, vector<4x256xf32>,
    %c0_29 = arith.constant 0 : index
    %c32 = arith.constant 32 : index
    %29 = vector.load %arg14[%c0_29, %c32] : memref<4x290xf32, #tpu.memory_space<vmem>>, vector<4x256xf32>
    %c0_30 = arith.constant 0 : index
    %c0_31 = arith.constant 0 : index
    %30 = vector.load %arg1[%c0_30, %c0_31] : memref<2x256xf32, #tpu.memory_space<vmem>>, vector<1x256xf32>
    %31 = vector.broadcast %30 : vector<1x256xf32> to vector<4x256xf32>
    %32 = arith.mulf %29, %31 : vector<4x256xf32>
    %c24 = arith.constant 24 : index
    %c0_32 = arith.constant 0 : index
    %33 = vector.load %arg18[%c24, %c0_32] : memref<36x256xf32, #tpu.memory_space<vmem>>, vector<4x256xf32>
    tpu.vector_store %arg18[%c24, %c0_32], %32 {strides = array<i32>} : memref<36x256xf32, #tpu.memory_space<vmem>>, vector<4x256xf32>,
    %c0_33 = arith.constant 0 : index
    %c33 = arith.constant 33 : index
    %34 = vector.load %arg14[%c0_33, %c33] : memref<4x290xf32, #tpu.memory_space<vmem>>, vector<4x256xf32>
    %c28 = arith.constant 28 : index
    %c0_34 = arith.constant 0 : index
    %35 = vector.load %arg18[%c28, %c0_34] : memref<36x256xf32, #tpu.memory_space<vmem>>, vector<4x256xf32>
    tpu.vector_store %arg18[%c28, %c0_34], %34 {strides = array<i32>} : memref<36x256xf32, #tpu.memory_space<vmem>>, vector<4x256xf32>,
    %c0_35 = arith.constant 0 : index
    %c34 = arith.constant 34 : index
    %36 = vector.load %arg14[%c0_35, %c34] : memref<4x290xf32, #tpu.memory_space<vmem>>, vector<4x256xf32>
    %c1_36 = arith.constant 1 : index
    %c0_37 = arith.constant 0 : index
    %37 = vector.load %arg1[%c1_36, %c0_37] : memref<2x256xf32, #tpu.memory_space<vmem>>, vector<1x256xf32>
    %38 = vector.broadcast %37 : vector<1x256xf32> to vector<4x256xf32>
    %39 = arith.mulf %36, %38 : vector<4x256xf32>
    %c32_38 = arith.constant 32 : index
    %c0_39 = arith.constant 0 : index
    %40 = vector.load %arg18[%c32_38, %c0_39] : memref<36x256xf32, #tpu.memory_space<vmem>>, vector<4x256xf32>
    tpu.vector_store %arg18[%c32_38, %c0_39], %39 {strides = array<i32>} : memref<36x256xf32, #tpu.memory_space<vmem>>, vector<4x256xf32>,
    %c0_40 = arith.constant 0 : index
    %c0_41 = arith.constant 0 : index
    %41 = vector.load %arg5[%c0_40, %c0_41] : memref<8x36xbf16, #tpu.memory_space<vmem>>, vector<8x36xbf16>
    %c0_42 = arith.constant 0 : index
    %c0_43 = arith.constant 0 : index
    %42 = vector.load %arg18[%c0_42, %c0_43] : memref<36x256xf32, #tpu.memory_space<vmem>>, vector<36x256xf32>
    %43 = arith.truncf %42 : vector<36x256xf32> to vector<36x256xbf16>
    %cst_44 = arith.constant dense<0.000000e+00> : vector<8x256xf32>
    %44 = tpu.matmul %41, %43, %cst_44 {dimension_numbers = #tpu.dot_dimension_numbers<[1], [0], [0], [1], [0, 0, 1, 1], [], []>} : vector<8x36xbf16>, vector<36x256xbf16>, vector<8x256xf32> -> vector<8x256xf32>
    %c0_45 = arith.constant 0 : index
    %c0_46 = arith.constant 0 : index
    %45 = vector.load %arg6[%c0_45, %c0_46] : memref<8x1xf32, #tpu.memory_space<vmem>>, vector<8x1xf32>
    %46 = vector.broadcast %45 : vector<8x1xf32> to vector<8x256xf32>
    %47 = arith.addf %44, %46 : vector<8x256xf32>
    %cst_47 = arith.constant 0.000000e+00 : f32
    %48 = vector.broadcast %cst_47 : f32 to vector<8x256xf32>
    %49 = arith.maximumf %47, %48 : vector<8x256xf32>
    %cst_48 = arith.constant 0.000000e+00 : f32
    %50 = vector.broadcast %cst_48 : f32 to vector<8x17xf32>
    %c0_49 = arith.constant 0 : index
    %c0_50 = arith.constant 0 : index
    %51 = vector.load %arg15[%c0_49, %c0_50] : memref<8x290xf32, #tpu.memory_space<vmem>>, vector<8x17xf32>
    tpu.vector_store %arg15[%c0_49, %c0_50], %50 {strides = array<i32>} : memref<8x290xf32, #tpu.memory_space<vmem>>, vector<8x17xf32>,
    %c0_51 = arith.constant 0 : index
    %c273_52 = arith.constant 273 : index
    %52 = vector.load %arg15[%c0_51, %c273_52] : memref<8x290xf32, #tpu.memory_space<vmem>>, vector<8x17xf32>
    tpu.vector_store %arg15[%c0_51, %c273_52], %50 {strides = array<i32>} : memref<8x290xf32, #tpu.memory_space<vmem>>, vector<8x17xf32>,
    %c0_53 = arith.constant 0 : index
    %c17_54 = arith.constant 17 : index
    %53 = vector.load %arg15[%c0_53, %c17_54] : memref<8x290xf32, #tpu.memory_space<vmem>>, vector<8x256xf32>
    tpu.vector_store %arg15[%c0_53, %c17_54], %49 {strides = array<i32>} : memref<8x290xf32, #tpu.memory_space<vmem>>, vector<8x256xf32>,
    %c0_55 = arith.constant 0 : index
    %c18_56 = arith.constant 18 : index
    %54 = vector.load %arg15[%c0_55, %c18_56] : memref<8x290xf32, #tpu.memory_space<vmem>>, vector<8x256xf32>
    %55 = arith.maximumf %49, %54 : vector<8x256xf32>
    %c0_57 = arith.constant 0 : index
    %c33_58 = arith.constant 33 : index
    %56 = vector.load %arg15[%c0_57, %c33_58] : memref<8x290xf32, #tpu.memory_space<vmem>>, vector<8x256xf32>
    %57 = arith.maximumf %55, %56 : vector<8x256xf32>
    %c0_59 = arith.constant 0 : index
    %c34_60 = arith.constant 34 : index
    %58 = vector.load %arg15[%c0_59, %c34_60] : memref<8x290xf32, #tpu.memory_space<vmem>>, vector<8x256xf32>
    %59 = arith.maximumf %57, %58 : vector<8x256xf32>
    %c0_61 = arith.constant 0 : index
    %c0_62 = arith.constant 0 : index
    %60 = vector.load %arg3[%c0_61, %c0_62] : memref<256x64xf32, #tpu.memory_space<vmem>>, vector<256x64xf32>
    %cst_63 = arith.constant dense<0.000000e+00> : vector<8x64xf32>
    %61 = tpu.matmul %59, %60, %cst_63 {dimension_numbers = #tpu.dot_dimension_numbers<[1], [0], [0], [1], [0, 0, 1, 1], [], []>} : vector<8x256xf32>, vector<256x64xf32>, vector<8x64xf32> -> vector<8x64xf32>
    %cst_64 = arith.constant 0.000000e+00 : f32
    %62 = vector.broadcast %cst_64 : f32 to vector<8x9xf32>
    %c0_65 = arith.constant 0 : index
    %c0_66 = arith.constant 0 : index
    %63 = vector.load %arg16[%c0_65, %c0_66] : memref<8x82xf32, #tpu.memory_space<vmem>>, vector<8x9xf32>
    tpu.vector_store %arg16[%c0_65, %c0_66], %62 {strides = array<i32>} : memref<8x82xf32, #tpu.memory_space<vmem>>, vector<8x9xf32>,
    %c0_67 = arith.constant 0 : index
    %c73 = arith.constant 73 : index
    %64 = vector.load %arg16[%c0_67, %c73] : memref<8x82xf32, #tpu.memory_space<vmem>>, vector<8x9xf32>
    tpu.vector_store %arg16[%c0_67, %c73], %62 {strides = array<i32>} : memref<8x82xf32, #tpu.memory_space<vmem>>, vector<8x9xf32>,
    %c0_68 = arith.constant 0 : index
    %c9 = arith.constant 9 : index
    %65 = vector.load %arg16[%c0_68, %c9] : memref<8x82xf32, #tpu.memory_space<vmem>>, vector<8x64xf32>
    tpu.vector_store %arg16[%c0_68, %c9], %61 {strides = array<i32>} : memref<8x82xf32, #tpu.memory_space<vmem>>, vector<8x64xf32>,
    %c0_69 = arith.constant 0 : index
    %c0_70 = arith.constant 0 : index
    %66 = vector.load %arg16[%c0_69, %c0_70] : memref<8x82xf32, #tpu.memory_space<vmem>>, vector<8x64xf32>
    %c0_71 = arith.constant 0 : index
    %c0_72 = arith.constant 0 : index
    %67 = vector.load %arg2[%c0_71, %c0_72] : memref<2x64xf32, #tpu.memory_space<vmem>>, vector<1x64xf32>
    %68 = vector.broadcast %67 : vector<1x64xf32> to vector<8x64xf32>
    %69 = arith.mulf %66, %68 : vector<8x64xf32>
    %c0_73 = arith.constant 0 : index
    %c0_74 = arith.constant 0 : index
    %70 = vector.load %arg19[%c0_73, %c0_74] : memref<72x64xf32, #tpu.memory_space<vmem>>, vector<8x64xf32>
    tpu.vector_store %arg19[%c0_73, %c0_74], %69 {strides = array<i32>} : memref<72x64xf32, #tpu.memory_space<vmem>>, vector<8x64xf32>,
    %c0_75 = arith.constant 0 : index
    %c1_76 = arith.constant 1 : index
    %71 = vector.load %arg16[%c0_75, %c1_76] : memref<8x82xf32, #tpu.memory_space<vmem>>, vector<8x64xf32>
    %c8_77 = arith.constant 8 : index
    %c0_78 = arith.constant 0 : index
    %72 = vector.load %arg19[%c8_77, %c0_78] : memref<72x64xf32, #tpu.memory_space<vmem>>, vector<8x64xf32>
    tpu.vector_store %arg19[%c8_77, %c0_78], %71 {strides = array<i32>} : memref<72x64xf32, #tpu.memory_space<vmem>>, vector<8x64xf32>,
    %c0_79 = arith.constant 0 : index
    %c2_80 = arith.constant 2 : index
    %73 = vector.load %arg16[%c0_79, %c2_80] : memref<8x82xf32, #tpu.memory_space<vmem>>, vector<8x64xf32>
    %c1_81 = arith.constant 1 : index
    %c0_82 = arith.constant 0 : index
    %74 = vector.load %arg2[%c1_81, %c0_82] : memref<2x64xf32, #tpu.memory_space<vmem>>, vector<1x64xf32>
    %75 = vector.broadcast %74 : vector<1x64xf32> to vector<8x64xf32>
    %76 = arith.mulf %73, %75 : vector<8x64xf32>
    %c16_83 = arith.constant 16 : index
    %c0_84 = arith.constant 0 : index
    %77 = vector.load %arg19[%c16_83, %c0_84] : memref<72x64xf32, #tpu.memory_space<vmem>>, vector<8x64xf32>
    tpu.vector_store %arg19[%c16_83, %c0_84], %76 {strides = array<i32>} : memref<72x64xf32, #tpu.memory_space<vmem>>, vector<8x64xf32>,
    %c0_85 = arith.constant 0 : index
    %c8_86 = arith.constant 8 : index
    %78 = vector.load %arg16[%c0_85, %c8_86] : memref<8x82xf32, #tpu.memory_space<vmem>>, vector<8x64xf32>
    %c0_87 = arith.constant 0 : index
    %c0_88 = arith.constant 0 : index
    %79 = vector.load %arg2[%c0_87, %c0_88] : memref<2x64xf32, #tpu.memory_space<vmem>>, vector<1x64xf32>
    %80 = vector.broadcast %79 : vector<1x64xf32> to vector<8x64xf32>
    %81 = arith.mulf %78, %80 : vector<8x64xf32>
    %c24_89 = arith.constant 24 : index
    %c0_90 = arith.constant 0 : index
    %82 = vector.load %arg19[%c24_89, %c0_90] : memref<72x64xf32, #tpu.memory_space<vmem>>, vector<8x64xf32>
    tpu.vector_store %arg19[%c24_89, %c0_90], %81 {strides = array<i32>} : memref<72x64xf32, #tpu.memory_space<vmem>>, vector<8x64xf32>,
    %c0_91 = arith.constant 0 : index
    %c9_92 = arith.constant 9 : index
    %83 = vector.load %arg16[%c0_91, %c9_92] : memref<8x82xf32, #tpu.memory_space<vmem>>, vector<8x64xf32>
    %c32_93 = arith.constant 32 : index
    %c0_94 = arith.constant 0 : index
    %84 = vector.load %arg19[%c32_93, %c0_94] : memref<72x64xf32, #tpu.memory_space<vmem>>, vector<8x64xf32>
    tpu.vector_store %arg19[%c32_93, %c0_94], %83 {strides = array<i32>} : memref<72x64xf32, #tpu.memory_space<vmem>>, vector<8x64xf32>,
    %c0_95 = arith.constant 0 : index
    %c10 = arith.constant 10 : index
    %85 = vector.load %arg16[%c0_95, %c10] : memref<8x82xf32, #tpu.memory_space<vmem>>, vector<8x64xf32>
    %c1_96 = arith.constant 1 : index
    %c0_97 = arith.constant 0 : index
    %86 = vector.load %arg2[%c1_96, %c0_97] : memref<2x64xf32, #tpu.memory_space<vmem>>, vector<1x64xf32>
    %87 = vector.broadcast %86 : vector<1x64xf32> to vector<8x64xf32>
    %88 = arith.mulf %85, %87 : vector<8x64xf32>
    %c40 = arith.constant 40 : index
    %c0_98 = arith.constant 0 : index
    %89 = vector.load %arg19[%c40, %c0_98] : memref<72x64xf32, #tpu.memory_space<vmem>>, vector<8x64xf32>
    tpu.vector_store %arg19[%c40, %c0_98], %88 {strides = array<i32>} : memref<72x64xf32, #tpu.memory_space<vmem>>, vector<8x64xf32>,
    %c0_99 = arith.constant 0 : index
    %c16_100 = arith.constant 16 : index
    %90 = vector.load %arg16[%c0_99, %c16_100] : memref<8x82xf32, #tpu.memory_space<vmem>>, vector<8x64xf32>
    %c0_101 = arith.constant 0 : index
    %c0_102 = arith.constant 0 : index
    %91 = vector.load %arg2[%c0_101, %c0_102] : memref<2x64xf32, #tpu.memory_space<vmem>>, vector<1x64xf32>
    %92 = vector.broadcast %91 : vector<1x64xf32> to vector<8x64xf32>
    %93 = arith.mulf %90, %92 : vector<8x64xf32>
    %c48 = arith.constant 48 : index
    %c0_103 = arith.constant 0 : index
    %94 = vector.load %arg19[%c48, %c0_103] : memref<72x64xf32, #tpu.memory_space<vmem>>, vector<8x64xf32>
    tpu.vector_store %arg19[%c48, %c0_103], %93 {strides = array<i32>} : memref<72x64xf32, #tpu.memory_space<vmem>>, vector<8x64xf32>,
    %c0_104 = arith.constant 0 : index
    %c17_105 = arith.constant 17 : index
    %95 = vector.load %arg16[%c0_104, %c17_105] : memref<8x82xf32, #tpu.memory_space<vmem>>, vector<8x64xf32>
    %c56 = arith.constant 56 : index
    %c0_106 = arith.constant 0 : index
    %96 = vector.load %arg19[%c56, %c0_106] : memref<72x64xf32, #tpu.memory_space<vmem>>, vector<8x64xf32>
    tpu.vector_store %arg19[%c56, %c0_106], %95 {strides = array<i32>} : memref<72x64xf32, #tpu.memory_space<vmem>>, vector<8x64xf32>,
    %c0_107 = arith.constant 0 : index
    %c18_108 = arith.constant 18 : index
    %97 = vector.load %arg16[%c0_107, %c18_108] : memref<8x82xf32, #tpu.memory_space<vmem>>, vector<8x64xf32>
    %c1_109 = arith.constant 1 : index
    %c0_110 = arith.constant 0 : index
    %98 = vector.load %arg2[%c1_109, %c0_110] : memref<2x64xf32, #tpu.memory_space<vmem>>, vector<1x64xf32>
    %99 = vector.broadcast %98 : vector<1x64xf32> to vector<8x64xf32>
    %100 = arith.mulf %97, %99 : vector<8x64xf32>
    %c64 = arith.constant 64 : index
    %c0_111 = arith.constant 0 : index
    %101 = vector.load %arg19[%c64, %c0_111] : memref<72x64xf32, #tpu.memory_space<vmem>>, vector<8x64xf32>
    tpu.vector_store %arg19[%c64, %c0_111], %100 {strides = array<i32>} : memref<72x64xf32, #tpu.memory_space<vmem>>, vector<8x64xf32>,
    %c0_112 = arith.constant 0 : index
    %c0_113 = arith.constant 0 : index
    %102 = vector.load %arg7[%c0_112, %c0_113] : memref<16x72xbf16, #tpu.memory_space<vmem>>, vector<16x72xbf16>
    %c0_114 = arith.constant 0 : index
    %c0_115 = arith.constant 0 : index
    %103 = vector.load %arg19[%c0_114, %c0_115] : memref<72x64xf32, #tpu.memory_space<vmem>>, vector<72x64xf32>
    %104 = arith.truncf %103 : vector<72x64xf32> to vector<72x64xbf16>
    %cst_116 = arith.constant dense<0.000000e+00> : vector<16x64xf32>
    %105 = tpu.matmul %102, %104, %cst_116 {dimension_numbers = #tpu.dot_dimension_numbers<[1], [0], [0], [1], [0, 0, 1, 1], [], []>} : vector<16x72xbf16>, vector<72x64xbf16>, vector<16x64xf32> -> vector<16x64xf32>
    %c0_117 = arith.constant 0 : index
    %c0_118 = arith.constant 0 : index
    %106 = vector.load %arg8[%c0_117, %c0_118] : memref<16x1xf32, #tpu.memory_space<vmem>>, vector<16x1xf32>
    %107 = vector.broadcast %106 : vector<16x1xf32> to vector<16x64xf32>
    %108 = arith.addf %105, %107 : vector<16x64xf32>
    %cst_119 = arith.constant 0.000000e+00 : f32
    %109 = vector.broadcast %cst_119 : f32 to vector<16x64xf32>
    %110 = arith.maximumf %108, %109 : vector<16x64xf32>
    %c0_120 = arith.constant 0 : index
    %c0_121 = arith.constant 0 : index
    %111 = vector.load %arg4[%c0_120, %c0_121] : memref<64x256xf32, #tpu.memory_space<vmem>>, vector<64x256xf32>
    %cst_122 = arith.constant dense<0.000000e+00> : vector<16x256xf32>
    %112 = tpu.matmul %110, %111, %cst_122 {dimension_numbers = #tpu.dot_dimension_numbers<[1], [0], [0], [1], [0, 0, 1, 1], [], []>} : vector<16x64xf32>, vector<64x256xf32>, vector<16x256xf32> -> vector<16x256xf32>
    %cst_123 = arith.constant 0.000000e+00 : f32
    %113 = vector.broadcast %cst_123 : f32 to vector<16x17xf32>
    %c0_124 = arith.constant 0 : index
    %c0_125 = arith.constant 0 : index
    %114 = vector.load %arg17[%c0_124, %c0_125] : memref<16x290xf32, #tpu.memory_space<vmem>>, vector<16x17xf32>
    tpu.vector_store %arg17[%c0_124, %c0_125], %113 {strides = array<i32>} : memref<16x290xf32, #tpu.memory_space<vmem>>, vector<16x17xf32>,
    %c0_126 = arith.constant 0 : index
    %c273_127 = arith.constant 273 : index
    %115 = vector.load %arg17[%c0_126, %c273_127] : memref<16x290xf32, #tpu.memory_space<vmem>>, vector<16x17xf32>
    tpu.vector_store %arg17[%c0_126, %c273_127], %113 {strides = array<i32>} : memref<16x290xf32, #tpu.memory_space<vmem>>, vector<16x17xf32>,
    %c0_128 = arith.constant 0 : index
    %c17_129 = arith.constant 17 : index
    %116 = vector.load %arg17[%c0_128, %c17_129] : memref<16x290xf32, #tpu.memory_space<vmem>>, vector<16x256xf32>
    tpu.vector_store %arg17[%c0_128, %c17_129], %112 {strides = array<i32>} : memref<16x290xf32, #tpu.memory_space<vmem>>, vector<16x256xf32>,
    %c0_130 = arith.constant 0 : index
    %c0_131 = arith.constant 0 : index
    %117 = vector.load %arg17[%c0_130, %c0_131] : memref<16x290xf32, #tpu.memory_space<vmem>>, vector<16x256xf32>
    %c0_132 = arith.constant 0 : index
    %c0_133 = arith.constant 0 : index
    %118 = vector.load %arg1[%c0_132, %c0_133] : memref<2x256xf32, #tpu.memory_space<vmem>>, vector<1x256xf32>
    %119 = vector.broadcast %118 : vector<1x256xf32> to vector<16x256xf32>
    %120 = arith.mulf %117, %119 : vector<16x256xf32>
    %c0_134 = arith.constant 0 : index
    %c0_135 = arith.constant 0 : index
    %121 = vector.load %arg20[%c0_134, %c0_135] : memref<216x256xf32, #tpu.memory_space<vmem>>, vector<16x256xf32>
    tpu.vector_store %arg20[%c0_134, %c0_135], %120 {strides = array<i32>} : memref<216x256xf32, #tpu.memory_space<vmem>>, vector<16x256xf32>,
    %c0_136 = arith.constant 0 : index
    %c1_137 = arith.constant 1 : index
    %122 = vector.load %arg17[%c0_136, %c1_137] : memref<16x290xf32, #tpu.memory_space<vmem>>, vector<16x256xf32>
    %c24_138 = arith.constant 24 : index
    %c0_139 = arith.constant 0 : index
    %123 = vector.load %arg20[%c24_138, %c0_139] : memref<216x256xf32, #tpu.memory_space<vmem>>, vector<16x256xf32>
    tpu.vector_store %arg20[%c24_138, %c0_139], %122 {strides = array<i32>} : memref<216x256xf32, #tpu.memory_space<vmem>>, vector<16x256xf32>,
    %c0_140 = arith.constant 0 : index
    %c2_141 = arith.constant 2 : index
    %124 = vector.load %arg17[%c0_140, %c2_141] : memref<16x290xf32, #tpu.memory_space<vmem>>, vector<16x256xf32>
    %c1_142 = arith.constant 1 : index
    %c0_143 = arith.constant 0 : index
    %125 = vector.load %arg1[%c1_142, %c0_143] : memref<2x256xf32, #tpu.memory_space<vmem>>, vector<1x256xf32>
    %126 = vector.broadcast %125 : vector<1x256xf32> to vector<16x256xf32>
    %127 = arith.mulf %124, %126 : vector<16x256xf32>
    %c48_144 = arith.constant 48 : index
    %c0_145 = arith.constant 0 : index
    %128 = vector.load %arg20[%c48_144, %c0_145] : memref<216x256xf32, #tpu.memory_space<vmem>>, vector<16x256xf32>
    tpu.vector_store %arg20[%c48_144, %c0_145], %127 {strides = array<i32>} : memref<216x256xf32, #tpu.memory_space<vmem>>, vector<16x256xf32>,
    %c0_146 = arith.constant 0 : index
    %c16_147 = arith.constant 16 : index
    %129 = vector.load %arg17[%c0_146, %c16_147] : memref<16x290xf32, #tpu.memory_space<vmem>>, vector<16x256xf32>
    %c0_148 = arith.constant 0 : index
    %c0_149 = arith.constant 0 : index
    %130 = vector.load %arg1[%c0_148, %c0_149] : memref<2x256xf32, #tpu.memory_space<vmem>>, vector<1x256xf32>
    %131 = vector.broadcast %130 : vector<1x256xf32> to vector<16x256xf32>
    %132 = arith.mulf %129, %131 : vector<16x256xf32>
    %c72 = arith.constant 72 : index
    %c0_150 = arith.constant 0 : index
    %133 = vector.load %arg20[%c72, %c0_150] : memref<216x256xf32, #tpu.memory_space<vmem>>, vector<16x256xf32>
    tpu.vector_store %arg20[%c72, %c0_150], %132 {strides = array<i32>} : memref<216x256xf32, #tpu.memory_space<vmem>>, vector<16x256xf32>,
    %c0_151 = arith.constant 0 : index
    %c17_152 = arith.constant 17 : index
    %134 = vector.load %arg17[%c0_151, %c17_152] : memref<16x290xf32, #tpu.memory_space<vmem>>, vector<16x256xf32>
    %c96 = arith.constant 96 : index
    %c0_153 = arith.constant 0 : index
    %135 = vector.load %arg20[%c96, %c0_153] : memref<216x256xf32, #tpu.memory_space<vmem>>, vector<16x256xf32>
    tpu.vector_store %arg20[%c96, %c0_153], %134 {strides = array<i32>} : memref<216x256xf32, #tpu.memory_space<vmem>>, vector<16x256xf32>,
    %c0_154 = arith.constant 0 : index
    %c18_155 = arith.constant 18 : index
    %136 = vector.load %arg17[%c0_154, %c18_155] : memref<16x290xf32, #tpu.memory_space<vmem>>, vector<16x256xf32>
    %c1_156 = arith.constant 1 : index
    %c0_157 = arith.constant 0 : index
    %137 = vector.load %arg1[%c1_156, %c0_157] : memref<2x256xf32, #tpu.memory_space<vmem>>, vector<1x256xf32>
    %138 = vector.broadcast %137 : vector<1x256xf32> to vector<16x256xf32>
    %139 = arith.mulf %136, %138 : vector<16x256xf32>
    %c120 = arith.constant 120 : index
    %c0_158 = arith.constant 0 : index
    %140 = vector.load %arg20[%c120, %c0_158] : memref<216x256xf32, #tpu.memory_space<vmem>>, vector<16x256xf32>
    tpu.vector_store %arg20[%c120, %c0_158], %139 {strides = array<i32>} : memref<216x256xf32, #tpu.memory_space<vmem>>, vector<16x256xf32>,
    %c0_159 = arith.constant 0 : index
    %c32_160 = arith.constant 32 : index
    %141 = vector.load %arg17[%c0_159, %c32_160] : memref<16x290xf32, #tpu.memory_space<vmem>>, vector<16x256xf32>
    %c0_161 = arith.constant 0 : index
    %c0_162 = arith.constant 0 : index
    %142 = vector.load %arg1[%c0_161, %c0_162] : memref<2x256xf32, #tpu.memory_space<vmem>>, vector<1x256xf32>
    %143 = vector.broadcast %142 : vector<1x256xf32> to vector<16x256xf32>
    %144 = arith.mulf %141, %143 : vector<16x256xf32>
    %c144 = arith.constant 144 : index
    %c0_163 = arith.constant 0 : index
    %145 = vector.load %arg20[%c144, %c0_163] : memref<216x256xf32, #tpu.memory_space<vmem>>, vector<16x256xf32>
    tpu.vector_store %arg20[%c144, %c0_163], %144 {strides = array<i32>} : memref<216x256xf32, #tpu.memory_space<vmem>>, vector<16x256xf32>,
    %c0_164 = arith.constant 0 : index
    %c33_165 = arith.constant 33 : index
    %146 = vector.load %arg17[%c0_164, %c33_165] : memref<16x290xf32, #tpu.memory_space<vmem>>, vector<16x256xf32>
    %c168 = arith.constant 168 : index
    %c0_166 = arith.constant 0 : index
    %147 = vector.load %arg20[%c168, %c0_166] : memref<216x256xf32, #tpu.memory_space<vmem>>, vector<16x256xf32>
    tpu.vector_store %arg20[%c168, %c0_166], %146 {strides = array<i32>} : memref<216x256xf32, #tpu.memory_space<vmem>>, vector<16x256xf32>,
    %c0_167 = arith.constant 0 : index
    %c34_168 = arith.constant 34 : index
    %148 = vector.load %arg17[%c0_167, %c34_168] : memref<16x290xf32, #tpu.memory_space<vmem>>, vector<16x256xf32>
    %c1_169 = arith.constant 1 : index
    %c0_170 = arith.constant 0 : index
    %149 = vector.load %arg1[%c1_169, %c0_170] : memref<2x256xf32, #tpu.memory_space<vmem>>, vector<1x256xf32>
    %150 = vector.broadcast %149 : vector<1x256xf32> to vector<16x256xf32>
    %151 = arith.mulf %148, %150 : vector<16x256xf32>
    %c192 = arith.constant 192 : index
    %c0_171 = arith.constant 0 : index
    %152 = vector.load %arg20[%c192, %c0_171] : memref<216x256xf32, #tpu.memory_space<vmem>>, vector<16x256xf32>
    tpu.vector_store %arg20[%c192, %c0_171], %151 {strides = array<i32>} : memref<216x256xf32, #tpu.memory_space<vmem>>, vector<16x256xf32>,
    %c0_172 = arith.constant 0 : index
    %c0_173 = arith.constant 0 : index
    %153 = vector.load %arg15[%c0_172, %c0_173] : memref<8x290xf32, #tpu.memory_space<vmem>>, vector<8x256xf32>
    %c0_174 = arith.constant 0 : index
    %c0_175 = arith.constant 0 : index
    %154 = vector.load %arg1[%c0_174, %c0_175] : memref<2x256xf32, #tpu.memory_space<vmem>>, vector<1x256xf32>
    %155 = vector.broadcast %154 : vector<1x256xf32> to vector<8x256xf32>
    %156 = arith.mulf %153, %155 : vector<8x256xf32>
    %c16_176 = arith.constant 16 : index
    %c0_177 = arith.constant 0 : index
    %157 = vector.load %arg20[%c16_176, %c0_177] : memref<216x256xf32, #tpu.memory_space<vmem>>, vector<8x256xf32>
    tpu.vector_store %arg20[%c16_176, %c0_177], %156 {strides = array<i32>} : memref<216x256xf32, #tpu.memory_space<vmem>>, vector<8x256xf32>,
    %c0_178 = arith.constant 0 : index
    %c1_179 = arith.constant 1 : index
    %158 = vector.load %arg15[%c0_178, %c1_179] : memref<8x290xf32, #tpu.memory_space<vmem>>, vector<8x256xf32>
    %c40_180 = arith.constant 40 : index
    %c0_181 = arith.constant 0 : index
    %159 = vector.load %arg20[%c40_180, %c0_181] : memref<216x256xf32, #tpu.memory_space<vmem>>, vector<8x256xf32>
    tpu.vector_store %arg20[%c40_180, %c0_181], %158 {strides = array<i32>} : memref<216x256xf32, #tpu.memory_space<vmem>>, vector<8x256xf32>,
    %c0_182 = arith.constant 0 : index
    %c2_183 = arith.constant 2 : index
    %160 = vector.load %arg15[%c0_182, %c2_183] : memref<8x290xf32, #tpu.memory_space<vmem>>, vector<8x256xf32>
    %c1_184 = arith.constant 1 : index
    %c0_185 = arith.constant 0 : index
    %161 = vector.load %arg1[%c1_184, %c0_185] : memref<2x256xf32, #tpu.memory_space<vmem>>, vector<1x256xf32>
    %162 = vector.broadcast %161 : vector<1x256xf32> to vector<8x256xf32>
    %163 = arith.mulf %160, %162 : vector<8x256xf32>
    %c64_186 = arith.constant 64 : index
    %c0_187 = arith.constant 0 : index
    %164 = vector.load %arg20[%c64_186, %c0_187] : memref<216x256xf32, #tpu.memory_space<vmem>>, vector<8x256xf32>
    tpu.vector_store %arg20[%c64_186, %c0_187], %163 {strides = array<i32>} : memref<216x256xf32, #tpu.memory_space<vmem>>, vector<8x256xf32>,
    %c0_188 = arith.constant 0 : index
    %c16_189 = arith.constant 16 : index
    %165 = vector.load %arg15[%c0_188, %c16_189] : memref<8x290xf32, #tpu.memory_space<vmem>>, vector<8x256xf32>
    %c0_190 = arith.constant 0 : index
    %c0_191 = arith.constant 0 : index
    %166 = vector.load %arg1[%c0_190, %c0_191] : memref<2x256xf32, #tpu.memory_space<vmem>>, vector<1x256xf32>
    %167 = vector.broadcast %166 : vector<1x256xf32> to vector<8x256xf32>
    %168 = arith.mulf %165, %167 : vector<8x256xf32>
    %c88 = arith.constant 88 : index
    %c0_192 = arith.constant 0 : index
    %169 = vector.load %arg20[%c88, %c0_192] : memref<216x256xf32, #tpu.memory_space<vmem>>, vector<8x256xf32>
    tpu.vector_store %arg20[%c88, %c0_192], %168 {strides = array<i32>} : memref<216x256xf32, #tpu.memory_space<vmem>>, vector<8x256xf32>,
    %c0_193 = arith.constant 0 : index
    %c17_194 = arith.constant 17 : index
    %170 = vector.load %arg15[%c0_193, %c17_194] : memref<8x290xf32, #tpu.memory_space<vmem>>, vector<8x256xf32>
    %c112 = arith.constant 112 : index
    %c0_195 = arith.constant 0 : index
    %171 = vector.load %arg20[%c112, %c0_195] : memref<216x256xf32, #tpu.memory_space<vmem>>, vector<8x256xf32>
    tpu.vector_store %arg20[%c112, %c0_195], %170 {strides = array<i32>} : memref<216x256xf32, #tpu.memory_space<vmem>>, vector<8x256xf32>,
    %c0_196 = arith.constant 0 : index
    %c18_197 = arith.constant 18 : index
    %172 = vector.load %arg15[%c0_196, %c18_197] : memref<8x290xf32, #tpu.memory_space<vmem>>, vector<8x256xf32>
    %c1_198 = arith.constant 1 : index
    %c0_199 = arith.constant 0 : index
    %173 = vector.load %arg1[%c1_198, %c0_199] : memref<2x256xf32, #tpu.memory_space<vmem>>, vector<1x256xf32>
    %174 = vector.broadcast %173 : vector<1x256xf32> to vector<8x256xf32>
    %175 = arith.mulf %172, %174 : vector<8x256xf32>
    %c136 = arith.constant 136 : index
    %c0_200 = arith.constant 0 : index
    %176 = vector.load %arg20[%c136, %c0_200] : memref<216x256xf32, #tpu.memory_space<vmem>>, vector<8x256xf32>
    tpu.vector_store %arg20[%c136, %c0_200], %175 {strides = array<i32>} : memref<216x256xf32, #tpu.memory_space<vmem>>, vector<8x256xf32>,
    %c0_201 = arith.constant 0 : index
    %c32_202 = arith.constant 32 : index
    %177 = vector.load %arg15[%c0_201, %c32_202] : memref<8x290xf32, #tpu.memory_space<vmem>>, vector<8x256xf32>
    %c0_203 = arith.constant 0 : index
    %c0_204 = arith.constant 0 : index
    %178 = vector.load %arg1[%c0_203, %c0_204] : memref<2x256xf32, #tpu.memory_space<vmem>>, vector<1x256xf32>
    %179 = vector.broadcast %178 : vector<1x256xf32> to vector<8x256xf32>
    %180 = arith.mulf %177, %179 : vector<8x256xf32>
    %c160 = arith.constant 160 : index
    %c0_205 = arith.constant 0 : index
    %181 = vector.load %arg20[%c160, %c0_205] : memref<216x256xf32, #tpu.memory_space<vmem>>, vector<8x256xf32>
    tpu.vector_store %arg20[%c160, %c0_205], %180 {strides = array<i32>} : memref<216x256xf32, #tpu.memory_space<vmem>>, vector<8x256xf32>,
    %c0_206 = arith.constant 0 : index
    %c33_207 = arith.constant 33 : index
    %182 = vector.load %arg15[%c0_206, %c33_207] : memref<8x290xf32, #tpu.memory_space<vmem>>, vector<8x256xf32>
    %c184 = arith.constant 184 : index
    %c0_208 = arith.constant 0 : index
    %183 = vector.load %arg20[%c184, %c0_208] : memref<216x256xf32, #tpu.memory_space<vmem>>, vector<8x256xf32>
    tpu.vector_store %arg20[%c184, %c0_208], %182 {strides = array<i32>} : memref<216x256xf32, #tpu.memory_space<vmem>>, vector<8x256xf32>,
    %c0_209 = arith.constant 0 : index
    %c34_210 = arith.constant 34 : index
    %184 = vector.load %arg15[%c0_209, %c34_210] : memref<8x290xf32, #tpu.memory_space<vmem>>, vector<8x256xf32>
    %c1_211 = arith.constant 1 : index
    %c0_212 = arith.constant 0 : index
    %185 = vector.load %arg1[%c1_211, %c0_212] : memref<2x256xf32, #tpu.memory_space<vmem>>, vector<1x256xf32>
    %186 = vector.broadcast %185 : vector<1x256xf32> to vector<8x256xf32>
    %187 = arith.mulf %184, %186 : vector<8x256xf32>
    %c208 = arith.constant 208 : index
    %c0_213 = arith.constant 0 : index
    %188 = vector.load %arg20[%c208, %c0_213] : memref<216x256xf32, #tpu.memory_space<vmem>>, vector<8x256xf32>
    tpu.vector_store %arg20[%c208, %c0_213], %187 {strides = array<i32>} : memref<216x256xf32, #tpu.memory_space<vmem>>, vector<8x256xf32>,
    %c0_214 = arith.constant 0 : index
    %c0_215 = arith.constant 0 : index
    %189 = vector.load %arg9[%c0_214, %c0_215] : memref<8x216xbf16, #tpu.memory_space<vmem>>, vector<8x216xbf16>
    %c0_216 = arith.constant 0 : index
    %c0_217 = arith.constant 0 : index
    %190 = vector.load %arg20[%c0_216, %c0_217] : memref<216x256xf32, #tpu.memory_space<vmem>>, vector<216x256xf32>
    %191 = arith.truncf %190 : vector<216x256xf32> to vector<216x256xbf16>
    %cst_218 = arith.constant dense<0.000000e+00> : vector<8x256xf32>
    %192 = tpu.matmul %189, %191, %cst_218 {dimension_numbers = #tpu.dot_dimension_numbers<[1], [0], [0], [1], [0, 0, 1, 1], [], []>} : vector<8x216xbf16>, vector<216x256xbf16>, vector<8x256xf32> -> vector<8x256xf32>
    %c0_219 = arith.constant 0 : index
    %c0_220 = arith.constant 0 : index
    %193 = vector.load %arg10[%c0_219, %c0_220] : memref<8x1xf32, #tpu.memory_space<vmem>>, vector<8x1xf32>
    %194 = vector.broadcast %193 : vector<8x1xf32> to vector<8x256xf32>
    %195 = arith.addf %192, %194 : vector<8x256xf32>
    %cst_221 = arith.constant 0.000000e+00 : f32
    %196 = vector.broadcast %cst_221 : f32 to vector<8x256xf32>
    %197 = arith.maximumf %195, %196 : vector<8x256xf32>
    %c0_222 = arith.constant 0 : index
    %c0_223 = arith.constant 0 : index
    %198 = vector.load %arg11[%c0_222, %c0_223] : memref<3x8xf32, #tpu.memory_space<vmem>>, vector<3x8xf32>
    %cst_224 = arith.constant dense<0.000000e+00> : vector<3x256xf32>
    %199 = tpu.matmul %198, %197, %cst_224 {dimension_numbers = #tpu.dot_dimension_numbers<[1], [0], [0], [1], [0, 0, 1, 1], [], []>} : vector<3x8xf32>, vector<8x256xf32>, vector<3x256xf32> -> vector<3x256xf32>
    %c0_225 = arith.constant 0 : index
    %c0_226 = arith.constant 0 : index
    %200 = vector.load %arg12[%c0_225, %c0_226] : memref<3x1xf32, #tpu.memory_space<vmem>>, vector<3x1xf32>
    %201 = vector.broadcast %200 : vector<3x1xf32> to vector<3x256xf32>
    %202 = arith.addf %199, %201 : vector<3x256xf32>
    %203 = vector.extract_strided_slice %202 {offsets = [0, 0], sizes = [1, 256], strides = [1, 1]} : vector<3x256xf32> to vector<1x256xf32>
    %c0_i32 = arith.constant 0 : i32
    %204 = vector.broadcast %c0_i32 : i32 to vector<1x256xi32>
    %205 = vector.extract_strided_slice %202 {offsets = [1, 0], sizes = [1, 256], strides = [1, 1]} : vector<3x256xf32> to vector<1x256xf32>
    %206 = arith.cmpf ogt, %205, %203 : vector<1x256xf32>
    %c1_i32 = arith.constant 1 : i32
    %207 = vector.broadcast %c1_i32 : i32 to vector<1x256xi32>
    %208 = arith.select %206, %207, %204 : vector<1x256xi1>, vector<1x256xi32>
    %209 = arith.select %206, %205, %203 : vector<1x256xi1>, vector<1x256xf32>
    %210 = vector.extract_strided_slice %202 {offsets = [2, 0], sizes = [1, 256], strides = [1, 1]} : vector<3x256xf32> to vector<1x256xf32>
    %211 = arith.cmpf ogt, %210, %209 : vector<1x256xf32>
    %c2_i32 = arith.constant 2 : i32
    %212 = vector.broadcast %c2_i32 : i32 to vector<1x256xi32>
    %213 = arith.select %211, %212, %208 : vector<1x256xi1>, vector<1x256xi32>
    %c0_227 = arith.constant 0 : index
    %c0_228 = arith.constant 0 : index
    %214 = vector.load %arg13[%c0_227, %c0_228] : memref<1x256xi32, #tpu.memory_space<vmem>>, vector<1x256xi32>
    tpu.vector_store %arg13[%c0_227, %c0_228], %213 {strides = array<i32>} : memref<1x256xi32, #tpu.memory_space<vmem>>, vector<1x256xi32>,
    return
  }
}

</mosaic_0001>

<llo_original>
// kernel: ttuseg_forward.1
$region0: #{ttuseg_forward.1}
  #allocation0 [shape = 'u32[]', space=smem, size = 0x4, offset = 0x4, fixed_abs, tag = 'smem constant byte address 0x4 - core index']
  #allocation1 [shape = 'u32[144,128]{1,0:T(1,128)}', space=vmem, size = 0x12000, scoped, tag = 'internal scratch']
  #allocation2 [shape = 'f32[4,290]{1,0:T(4,128)}', space=vmem, size = 0x1800, scoped, tag = 'scratch operand']
  #allocation3 [shape = 'f32[8,290]{1,0:T(8,128)}', space=vmem, size = 0x3000, scoped, tag = 'scratch operand']
  #allocation4 [shape = 'f32[8,82]{1,0:T(8,128)}', space=vmem, size = 0x1000, scoped, tag = 'scratch operand']
  #allocation5 [shape = 'f32[16,290]{1,0:T(8,128)}', space=vmem, size = 0x6000, scoped, tag = 'scratch operand']
  #allocation6 [shape = 'f32[36,256]{1,0:T(8,128)}', space=vmem, size = 0xa000, scoped, tag = 'scratch operand']
  #allocation7 [shape = 'f32[72,64]{1,0:T(8,128)}', space=vmem, size = 0x9000, scoped, tag = 'scratch operand']
  #allocation8 [shape = 'f32[216,256]{1,0:T(8,128)}', space=vmem, size = 0x36000, scoped, tag = 'scratch operand']
  %s0 = inlined_call_operand.vmem [shape: f32[4,256], index: 0, kind: input, shape index: {}]
  %s1 = inlined_call_operand.vmem [shape: f32[2,256], index: 1, kind: input, shape index: {}]
  %s2 = inlined_call_operand.hbm [shape: f32[2,64], index: 2, kind: input, shape index: {}]
  %s3 = inlined_call_operand.vmem [shape: f32[256,64], index: 3, kind: input, shape index: {}]
  %s4 = inlined_call_operand.hbm [shape: f32[64,256], index: 4, kind: input, shape index: {}]
  %s5 = inlined_call_operand.vmem [shape: bf16[8,36], index: 5, kind: input, shape index: {}]
  %s6 = inlined_call_operand.vmem [shape: f32[8,1], index: 6, kind: input, shape index: {}]
  %s7 = inlined_call_operand.vmem [shape: bf16[16,72], index: 7, kind: input, shape index: {}]
  %s8 = inlined_call_operand.vmem [shape: f32[16,1], index: 8, kind: input, shape index: {}]
  %s9 = inlined_call_operand.vmem [shape: bf16[8,216], index: 9, kind: input, shape index: {}]
  %s10 = inlined_call_operand.vmem [shape: f32[8,1], index: 10, kind: input, shape index: {}]
  %s11 = inlined_call_operand.vmem [shape: f32[3,8], index: 11, kind: input, shape index: {}]
  %s12 = inlined_call_operand.vmem [shape: f32[3,1], index: 12, kind: input, shape index: {}]
  %s13 = inlined_call_operand.vmem [shape: s32[1,256], index: 13, kind: output, shape index: {}]
  %s14 = sld [smem:[#allocation0]]
  $region70: #{ttuseg_forward.1} parent=0
    _
  %s16 = ssub.s32 1, %s14
  %s17 = scalar_select 0, %s16, %s14
  $region1: #{ttuseg_forward.1} parent=0
    #allocation9 [shape = 'u8[1024]{0}', space=vmem, size = 0x400, scoped, tag = 'input window, operand 2, single buffered']
    #allocation10 [shape = 's32[1]{0}', space=sflag, size = 0x4, scoped, tag = 'scoped memory for ttuseg_forward.1']
    #allocation11 [shape = 'u8[65536]{0}', space=vmem, size = 0x10000, scoped, tag = 'input window, operand 4, single buffered']
    #allocation12 [shape = 's32[1]{0}', space=sflag, size = 0x4, scoped, tag = 'scoped memory for ttuseg_forward.1']
    %18 = vsyncpa [#allocation10], 0
    %19 = vsyncpa [#allocation12], 0
    // Predicated region
    $region2: #{ttuseg_forward.1} parent=1 // pred_check
      _
    $region3: #{ttuseg_forward.1} parent=1 // pred_check_branch
      %21 = sbr.rel (0) target = $region5
    $region4: #{ttuseg_forward.1} parent=1 // pred_region
      _
    $region5: #{ttuseg_forward.1} parent=1 // pred_fallthru
      _
    // Predicated region
    $region6: #{ttuseg_forward.1} parent=1 // pred_check
      _
    $region7: #{ttuseg_forward.1} parent=1 // pred_check_branch
      %23 = sbr.rel (0) target = $region9
    $region8: #{ttuseg_forward.1} parent=1 // pred_region
      _
    $region9: #{ttuseg_forward.1} parent=1 // pred_fallthru
      _
    // Predicated region
    $region10: #{ttuseg_forward.1} parent=1 // pred_check
      _
    $region11: #{ttuseg_forward.1} parent=1 // pred_check_branch
      %25 = sbr.rel (0) target = $region13
    $region12: #{ttuseg_forward.1} parent=1 // pred_region
      %s27 = ssub.s32 32, 32
      %28 = vsyncadd [#allocation10], %s27
      %s30 = sshll.u32 [#allocation9], 4
      %s31 = int_to_ptr.vmem [resolvable:$true] %s30
      %33 = dma.hbm_to_vmem [thread:$0]  %s2, 32, %s31, [#allocation10]
    $region13: #{ttuseg_forward.1} parent=1 // pred_fallthru
      _
    // Predicated region
    $region14: #{ttuseg_forward.1} parent=1 // pred_check
      _
    $region15: #{ttuseg_forward.1} parent=1 // pred_check_branch
      %35 = sbr.rel (0) target = $region17
    $region16: #{ttuseg_forward.1} parent=1 // pred_region
      _
    $region17: #{ttuseg_forward.1} parent=1 // pred_fallthru
      _
    // Predicated region
    $region18: #{ttuseg_forward.1} parent=1 // pred_check
      _
    $region19: #{ttuseg_forward.1} parent=1 // pred_check_branch
      %37 = sbr.rel (0) target = $region21
    $region20: #{ttuseg_forward.1} parent=1 // pred_region
      %s39 = ssub.s32 2048, 2048
      %40 = vsyncadd [#allocation12], %s39
      %s41 = sshll.u32 [#allocation11], 4
      %s42 = int_to_ptr.vmem [resolvable:$true] %s41
      %47 = dma.hbm_to_vmem [thread:$0]  %s4, 2048, %s42, [#allocation12], 256, 256, 16
    $region21: #{ttuseg_forward.1} parent=1 // pred_fallthru
      _
    // Predicated region
    $region22: #{ttuseg_forward.1} parent=1 // pred_check
      _
    $region23: #{ttuseg_forward.1} parent=1 // pred_check_branch
      %49 = sbr.rel (0) target = $region25
    $region24: #{ttuseg_forward.1} parent=1 // pred_region
      _
    $region25: #{ttuseg_forward.1} parent=1 // pred_fallthru
      _
    // Predicated region
    $region26: #{ttuseg_forward.1} parent=1 // pred_check
      _
    $region27: #{ttuseg_forward.1} parent=1 // pred_check_branch
      %51 = sbr.rel (0) target = $region29
    $region28: #{ttuseg_forward.1} parent=1 // pred_region
      _
    $region29: #{ttuseg_forward.1} parent=1 // pred_fallthru
      _
    // Predicated region
    $region30: #{ttuseg_forward.1} parent=1 // pred_check
      _
    $region31: #{ttuseg_forward.1} parent=1 // pred_check_branch
      %53 = sbr.rel (0) target = $region33
    $region32: #{ttuseg_forward.1} parent=1 // pred_region
      _
    $region33: #{ttuseg_forward.1} parent=1 // pred_fallthru
      _
    // Predicated region
    $region34: #{ttuseg_forward.1} parent=1 // pred_check
      _
    $region35: #{ttuseg_forward.1} parent=1 // pred_check_branch
      %55 = sbr.rel (0) target = $region37
    $region36: #{ttuseg_forward.1} parent=1 // pred_region
      _
    $region37: #{ttuseg_forward.1} parent=1 // pred_fallthru
      _
    // Predicated region
    $region38: #{ttuseg_forward.1} parent=1 // pred_check
      _
    $region39: #{ttuseg_forward.1} parent=1 // pred_check_branch
      %57 = sbr.rel (0) target = $region41
    $region40: #{ttuseg_forward.1} parent=1 // pred_region
      _
    $region41: #{ttuseg_forward.1} parent=1 // pred_fallthru
      _
    // Predicated region
    $region42: #{ttuseg_forward.1} parent=1 // pred_check
      _
    $region43: #{ttuseg_forward.1} parent=1 // pred_check_branch
      %59 = sbr.rel (0) target = $region45
    $region44: #{ttuseg_forward.1} parent=1 // pred_region
      _
    $region45: #{ttuseg_forward.1} parent=1 // pred_fallthru
      _
    // Predicated region
    $region46: #{ttuseg_forward.1} parent=1 // pred_check
      _
    $region47: #{ttuseg_forward.1} parent=1 // pred_check_branch
      %61 = sbr.rel (0) target = $region49
    $region48: #{ttuseg_forward.1} parent=1 // pred_region
      _
    $region49: #{ttuseg_forward.1} parent=1 // pred_fallthru
      _
    // Predicated region
    $region50: #{ttuseg_forward.1} parent=1 // pred_check
      _
    $region51: #{ttuseg_forward.1} parent=1 // pred_check_branch
      %63 = sbr.rel (0) target = $region53
    $region52: #{ttuseg_forward.1} parent=1 // pred_region
      _
    $region53: #{ttuseg_forward.1} parent=1 // pred_fallthru
      _
    // Predicated region
    $region54: #{ttuseg_forward.1} parent=1 // pred_check
      _
    $region55: #{ttuseg_forward.1} parent=1 // pred_check_branch
      %65 = sbr.rel (0) target = $region57
    $region56: #{ttuseg_forward.1} parent=1 // pred_region
      %66 = dma.done [#allocation10], 32
    $region57: #{ttuseg_forward.1} parent=1 // pred_fallthru
      _
    // Predicated region
    $region58: #{ttuseg_forward.1} parent=1 // pred_check
      _
    $region59: #{ttuseg_forward.1} parent=1 // pred_check_branch
      %68 = sbr.rel (0) target = $region61
    $region60: #{ttuseg_forward.1} parent=1 // pred_region
      %69 = dma.done [#allocation12], 2048
    $region61: #{ttuseg_forward.1} parent=1 // pred_fallthru
      _
    %vm71 = vcmask 134144
    %72 = vst.msk [vmem:[#allocation2] sm:$0xf] %vm71, 0.0
    %vm73 = vcmask 273544
    %74 = vst.msk [vmem:[#allocation2 + $0x8] sm:$0xf] %vm73, 0.0
    %v75 = vld [vmem:[%s0] sm:$0xff]
    %77 = vrot.lane.b32.xlu0 %v75, 17
    %v78 = vpop.permute.xlu0 %77
    %v79 = vrot.slane %v78, 4
    %vm80 = vcmask 138240
    %v81 = vsel %vm80, %v79, %v78
    %vm84 = vcmask 1043592
    %vm85 = vcmask 1047556
    %vm86 = vmor %vm85, %vm84
    %87 = vst.msk [vmem:[#allocation2] sm:$0xff] %vm86, %v81
    %88 = vst.msk [vmem:[#allocation2 + $0x8] sm:$0xf] %vm71, %v79
    %v89 = vld [vmem:[#allocation2] sm:$0xff]
    %v90 = vld [vmem:[%s1] ss:$2 sm:$0x3]
    %v92 = vlaneseq
    %v93 = vshrl.u32 %v92, 7
    %v94 = vsub.s32 0, %v93
    %v95 = vrot.slane %v90, %v94
    %v96 = vlaneseq
    %v97 = vshrl.u32 %v96, 7
    %v98 = vsub.s32 1, %v97
    %v99 = vrot.slane %v90, %v98
    %v100 = vcombine.low %v95, %v99
    %v102 = vmul.f32 %v89, %v100
    %v104 = vcombine.high %v102, %v102
    %106 = vst [vmem:[#allocation6] sm:$0xf] %v102
    %107 = vst [vmem:[#allocation6 + $0x8] sm:$0xf] %v104
    %v108 = vld [vmem:[#allocation2] sm:$0xff]
    %v109 = vld [vmem:[#allocation2 + $0x8] sm:$0xf]
    %v112 = vcombine.low %v108, %v108
    %v113 = vcombine.low %v109, %v109
    %114 = vrot.lane.b32.xlu0 %v112, 127
    %v115 = vpop.permute.xlu0 %114
    %116 = vrot.lane.b32.xlu0 %v108, 127
    %v117 = vpop.permute.xlu0 %116
    %118 = vrot.lane.b32.xlu0 %v113, 127
    %v119 = vpop.permute.xlu0 %118
    %vm120 = vcmask 1039360
    %v121 = vsel %vm120, %v115, %v117
    %v122 = vsel %vm120, %v117, %v119
    %125 = vst [vmem:[#allocation6] sm:$0xf0] %v121
    %126 = vst [vmem:[#allocation6 + $0x8] sm:$0xf0] %v122
    %v127 = vld [vmem:[#allocation2] sm:$0xff]
    %v128 = vld [vmem:[#allocation2 + $0x8] sm:$0xf]
    %s129 = scalar_lea.vmem %s1, 1
    %v130 = vld [vmem:[%s129] ss:$2 sm:$0x3]
    %v132 = vlaneseq
    %v133 = vshrl.u32 %v132, 7
    %v134 = vsub.s32 0, %v133
    %v135 = vrot.slane %v130, %v134
    %v136 = vlaneseq
    %v137 = vshrl.u32 %v136, 7
    %v138 = vsub.s32 1, %v137
    %v139 = vrot.slane %v130, %v138
    %v140 = vcombine.low %v135, %v139
    %141 = vrot.lane.b32.xlu0 %v140, 2
    %v142 = vpop.permute.xlu0 %141
    %v143 = vrot.slane %v142, 4
    %vm144 = vcmask 15360
    %v145 = vsel %vm144, %v143, %v142
    %v148 = vmul.f32 %v127, %v145
    %v149 = vmul.f32 %v128, %v143
    %v152 = vcombine.high %v148, %v148
    %153 = vrot.lane.b32.xlu0 %v148, 126
    %v154 = vpop.permute.xlu0 %153
    %155 = vrot.lane.b32.xlu0 %v152, 126
    %v156 = vpop.permute.xlu0 %155
    %157 = vrot.lane.b32.xlu0 %v149, 126
    %v158 = vpop.permute.xlu0 %157
    %vm159 = vcmask 1031168
    %v160 = vsel %vm159, %v154, %v156
    %v161 = vsel %vm159, %v156, %v158
    %164 = vst [vmem:[#allocation6 + $0x10] sm:$0xf] %v160
    %165 = vst [vmem:[#allocation6 + $0x18] sm:$0xf] %v161
    %v166 = vld [vmem:[#allocation2] sm:$0xff]
    %v167 = vld [vmem:[#allocation2 + $0x8] sm:$0xf]
    %v168 = vld [vmem:[%s1] ss:$2 sm:$0x3]
    %v170 = vlaneseq
    %v171 = vshrl.u32 %v170, 7
    %v172 = vsub.s32 0, %v171
    %v173 = vrot.slane %v168, %v172
    %v174 = vlaneseq
    %v175 = vshrl.u32 %v174, 7
    %v176 = vsub.s32 1, %v175
    %v177 = vrot.slane %v168, %v176
    %v178 = vcombine.low %v173, %v177
    %179 = vrot.lane.b32.xlu0 %v178, 16
    %v180 = vpop.permute.xlu0 %179
    %v181 = vrot.slane %v180, 4
    %vm182 = vcmask 130048
    %v183 = vsel %vm182, %v181, %v180
    %v186 = vmul.f32 %v166, %v183
    %v187 = vmul.f32 %v167, %v181
    %v190 = vcombine.low %v186, %v186
    %v191 = vcombine.low %v187, %v187
    %192 = vrot.lane.b32.xlu0 %v190, 112
    %v193 = vpop.permute.xlu0 %192
    %194 = vrot.lane.b32.xlu0 %v186, 112
    %v195 = vpop.permute.xlu0 %194
    %196 = vrot.lane.b32.xlu0 %v191, 112
    %v197 = vpop.permute.xlu0 %196
    %vm198 = vcmask 916480
    %v199 = vsel %vm198, %v193, %v195
    %v200 = vsel %vm198, %v195, %v197
    %203 = vst [vmem:[#allocation6 + $0x10] sm:$0xf0] %v199
    %204 = vst [vmem:[#allocation6 + $0x18] sm:$0xf0] %v200
    %v205 = vld [vmem:[#allocation2] sm:$0xff]
    %v206 = vld [vmem:[#allocation2 + $0x8] sm:$0xf]
    %v209 = vcombine.high %v205, %v205
    %210 = vrot.lane.b32.xlu0 %v205, 111
    %v211 = vpop.permute.xlu0 %210
    %212 = vrot.lane.b32.xlu0 %v209, 111
    %v213 = vpop.permute.xlu0 %212
    %214 = vrot.lane.b32.xlu0 %v206, 111
    %v215 = vpop.permute.xlu0 %214
    %vm216 = vcmask 908288
    %v217 = vsel %vm216, %v211, %v213
    %v218 = vsel %vm216, %v213, %v215
    %221 = vst [vmem:[#allocation6 + $0x20] sm:$0xf] %v217
    %222 = vst [vmem:[#allocation6 + $0x28] sm:$0xf] %v218
    %v223 = vld [vmem:[#allocation2] sm:$0xff]
    %v224 = vld [vmem:[#allocation2 + $0x8] sm:$0xf]
    %v225 = vld [vmem:[%s129] ss:$2 sm:$0x3]
    %v227 = vlaneseq
    %v228 = vshrl.u32 %v227, 7
    %v229 = vsub.s32 0, %v228
    %v230 = vrot.slane %v225, %v229
    %v231 = vlaneseq
    %v232 = vshrl.u32 %v231, 7
    %v233 = vsub.s32 1, %v232
    %v234 = vrot.slane %v225, %v233
    %v235 = vcombine.low %v230, %v234
    %236 = vrot.lane.b32.xlu0 %v235, 18
    %v237 = vpop.permute.xlu0 %236
    %v238 = vrot.slane %v237, 4
    %vm239 = vcmask 146432
    %v240 = vsel %vm239, %v238, %v237
    %v243 = vmul.f32 %v223, %v240
    %v244 = vmul.f32 %v224, %v238
    %v247 = vcombine.low %v243, %v243
    %v248 = vcombine.low %v244, %v244
    %249 = vrot.lane.b32.xlu0 %v247, 110
    %v250 = vpop.permute.xlu0 %249
    %251 = vrot.lane.b32.xlu0 %v243, 110
    %v252 = vpop.permute.xlu0 %251
    %253 = vrot.lane.b32.xlu0 %v248, 110
    %v254 = vpop.permute.xlu0 %253
    %vm255 = vcmask 900096
    %v256 = vsel %vm255, %v250, %v252
    %v257 = vsel %vm255, %v252, %v254
    %260 = vst [vmem:[#allocation6 + $0x20] sm:$0xf0] %v256
    %261 = vst [vmem:[#allocation6 + $0x28] sm:$0xf0] %v257
    %v262 = vld [vmem:[#allocation2] sm:$0xff]
    %v263 = vld [vmem:[#allocation2 + $0x8] sm:$0xf]
    %v264 = vld [vmem:[%s1] ss:$2 sm:$0x3]
    %v266 = vlaneseq
    %v267 = vshrl.u32 %v266, 7
    %v268 = vsub.s32 0, %v267
    %v269 = vrot.slane %v264, %v268
    %v270 = vlaneseq
    %v271 = vshrl.u32 %v270, 7
    %v272 = vsub.s32 1, %v271
    %v273 = vrot.slane %v264, %v272
    %v274 = vcombine.low %v269, %v273
    %275 = vrot.lane.b32.xlu0 %v274, 32
    %v276 = vpop.permute.xlu0 %275
    %v277 = vrot.slane %v276, 4
    %vm278 = vcmask 261120
    %v279 = vsel %vm278, %v277, %v276
    %v282 = vmul.f32 %v262, %v279
    %v283 = vmul.f32 %v263, %v277
    %v286 = vcombine.high %v282, %v282
    %287 = vrot.lane.b32.xlu0 %v282, 96
    %v288 = vpop.permute.xlu0 %287
    %289 = vrot.lane.b32.xlu0 %v286, 96
    %v290 = vpop.permute.xlu0 %289
    %291 = vrot.lane.b32.xlu0 %v283, 96
    %v292 = vpop.permute.xlu0 %291
    %vm293 = vcmask 785408
    %v294 = vsel %vm293, %v288, %v290
    %v295 = vsel %vm293, %v290, %v292
    %298 = vst [vmem:[#allocation6 + $0x30] sm:$0xf] %v294
    %299 = vst [vmem:[#allocation6 + $0x38] sm:$0xf] %v295
    %v300 = vld [vmem:[#allocation2] sm:$0xff]
    %v301 = vld [vmem:[#allocation2 + $0x8] sm:$0xf]
    %v304 = vcombine.low %v300, %v300
    %v305 = vcombine.low %v301, %v301
    %306 = vrot.lane.b32.xlu0 %v304, 95
    %v307 = vpop.permute.xlu0 %306
    %308 = vrot.lane.b32.xlu0 %v300, 95
    %v309 = vpop.permute.xlu0 %308
    %310 = vrot.lane.b32.xlu0 %v305, 95
    %v311 = vpop.permute.xlu0 %310
    %vm312 = vcmask 777216
    %v313 = vsel %vm312, %v307, %v309
    %v314 = vsel %vm312, %v309, %v311
    %317 = vst [vmem:[#allocation6 + $0x30] sm:$0xf0] %v313
    %318 = vst [vmem:[#allocation6 + $0x38] sm:$0xf0] %v314
    %v319 = vld [vmem:[#allocation2] sm:$0xff]
    %v320 = vld [vmem:[#allocation2 + $0x8] sm:$0xf]
    %v321 = vld [vmem:[%s129] ss:$2 sm:$0x3]
    %v323 = vlaneseq
    %v324 = vshrl.u32 %v323, 7
    %v325 = vsub.s32 0, %v324
    %v326 = vrot.slane %v321, %v325
    %v327 = vlaneseq
    %v328 = vshrl.u32 %v327, 7
    %v329 = vsub.s32 1, %v328
    %v330 = vrot.slane %v321, %v329
    %v331 = vcombine.low %v326, %v330
    %332 = vrot.lane.b32.xlu0 %v331, 34
    %v333 = vpop.permute.xlu0 %332
    %v334 = vrot.slane %v333, 4
    %vm335 = vcmask 277504
    %v336 = vsel %vm335, %v334, %v333
    %v339 = vmul.f32 %v319, %v336
    %v340 = vmul.f32 %v320, %v334
    %v343 = vcombine.high %v339, %v339
    %344 = vrot.lane.b32.xlu0 %v339, 94
    %v345 = vpop.permute.xlu0 %344
    %346 = vrot.lane.b32.xlu0 %v343, 94
    %v347 = vpop.permute.xlu0 %346
    %348 = vrot.lane.b32.xlu0 %v340, 94
    %v349 = vpop.permute.xlu0 %348
    %vm350 = vcmask 769024
    %v351 = vsel %vm350, %v345, %v347
    %v352 = vsel %vm350, %v347, %v349
    %355 = vst [vmem:[#allocation6 + $0x40] sm:$0xf] %v351
    %356 = vst [vmem:[#allocation6 + $0x48] sm:$0xf] %v352
    %v357 = vld [vmem:[%s5] sm:$0xf]
    %v358 = vld [vmem:[#allocation6] sm:$0xff]
    %v359 = vld [vmem:[#allocation6 + $0x8] sm:$0xff]
    %v360 = vld [vmem:[#allocation6 + $0x10] sm:$0xff]
    %v361 = vld [vmem:[#allocation6 + $0x18] sm:$0xff]
    %v362 = vld [vmem:[#allocation6 + $0x20] sm:$0xff]
    %v363 = vld [vmem:[#allocation6 + $0x28] sm:$0xff]
    %v364 = vld [vmem:[#allocation6 + $0x30] sm:$0xff]
    %v365 = vld [vmem:[#allocation6 + $0x38] sm:$0xff]
    %v366 = vld [vmem:[#allocation6 + $0x40] sm:$0xf]
    %v367 = vld [vmem:[#allocation6 + $0x48] sm:$0xf]
    %v368 = vpack.c.bf16 %v360, %v358
    %v369 = vpack.c.bf16 %v361, %v359
    %v370 = vpack.c.bf16 %v364, %v362
    %v371 = vpack.c.bf16 %v365, %v363
    %v372 = vpack.c.bf16 %v366, %v366
    %v373 = vpack.c.bf16 %v367, %v367
    %v374 = vld [vmem:[%s6] sm:$0xff]
    %376 = vset.pattern.permute.xlu0 0
    %377 = vperm.xlu0 %376, %v374
    %v378 = vpop.permute.xlu0 %377
    %vm380 = vcmask 293888
    %v382 = vsel %vm380, %v357, 0
    %vm384 = vcmask 1041408
    %v386 = vsel %vm384, %v372, 0
    %v389 = vsel %vm384, %v373, 0
    %391 = vmatprep.subr.bf16.mxu0 %v369
    %392 = vmatpush1.bf16.msra.mxu0 %v368
    %393 = vmatprep.subr.bf16.mxu0 %v371
    %394 = vmatpush1.bf16.msra.mxu0 %v370
    %395 = vmatprep.subr.bf16.mxu0 %v389
    %396 = vmatpush1.bf16.msra.mxu0 %v386
    %397 = vmatprep.subr.bf16.mxu0 0
    %398 = vmatpush1.bf16.msra.mxu0 0
    %399 = vmatprep.subr.bf16.mxu0 0
    %400 = vmatpush1.bf16.msra.mxu0 0
    %401 = vmatprep.subr.bf16.mxu0 0
    %402 = vmatpush1.bf16.msra.mxu0 0
    %403 = vmatprep.subr.bf16.mxu0 0
    %404 = vmatpush1.bf16.msra.mxu0 0
    %405 = vmatprep.subr.bf16.mxu0 0
    %406 = vmatpush1.bf16.msra.mxu0 0
    %407 = vmatprep.subr.bf16.mxu0 0
    %408 = vmatpush1.bf16.msra.mxu0 0
    %409 = vmatprep.subr.bf16.mxu0 0
    %410 = vmatpush1.bf16.msra.mxu0 0
    %411 = vmatprep.subr.bf16.mxu0 0
    %412 = vmatpush1.bf16.msra.mxu0 0
    %413 = vmatprep.subr.bf16.mxu0 0
    %414 = vmatpush1.bf16.msra.mxu0 0
    %415 = vmatprep.subr.bf16.mxu0 0
    %416 = vmatpush1.bf16.msra.mxu0 0
    %417 = vmatprep.subr.bf16.mxu0 0
    %418 = vmatpush1.bf16.msra.mxu0 0
    %419 = vmatprep.subr.bf16.mxu0 0
    %420 = vmatpush1.bf16.msra.mxu0 0
    %421 = vmatprep.subr.bf16.mxu0 0
    %422 = vmatpush1.bf16.msra.mxu0 0
    %423 = vmatprep.mubr.bf16.mxu0 0
    %424 = vmatmul.mubr.bf16.gmra.mrb[0].mxu0 %v382
    %v425 = vpop.f32.mrb[0].mxu0
    %v426 = vadd.f32 %v378, %v425
    %v427 = vpop.f32.mrb[0].mxu0
    %v428 = vadd.f32 %v378, %v427
    %v429 = vpop.f32.mrb[0].mxu0
    %v430 = vpop.f32.mrb[0].mxu0
    %431 = vdwg.mxu0
    %v432 = vmax.f32 %v426, 0.0
    %v433 = vmax.f32 %v428, 0.0
    %434 = vst.msk [vmem:[#allocation3] sm:$0xff] %vm80, 0.0
    %vm435 = vcmask 277640
    %436 = vst.msk [vmem:[#allocation3 + $0x10] sm:$0xff] %vm435, 0.0
    %439 = vrot.lane.b32.xlu0 %v432, 17
    %v440 = vpop.permute.xlu0 %439
    %441 = vrot.lane.b32.xlu0 %v433, 17
    %v442 = vpop.permute.xlu0 %441
    %v443 = vsel %vm80, %v440, %v442
    %vm447 = vcmask 1047688
    %448 = vst.msk [vmem:[#allocation3] sm:$0xff] %vm447, %v440
    %449 = vst [vmem:[#allocation3 + $0x8] sm:$0xff] %v443
    %450 = vst.msk [vmem:[#allocation3 + $0x10] sm:$0xff] %vm80, %v442
    %v451 = vld [vmem:[#allocation3] sm:$0xff]
    %v452 = vld [vmem:[#allocation3 + $0x8] sm:$0xff]
    %v453 = vld [vmem:[#allocation3 + $0x10] sm:$0xff]
    %457 = vrot.lane.b32.xlu0 %v451, 110
    %v458 = vpop.permute.xlu0 %457
    %459 = vrot.lane.b32.xlu0 %v452, 110
    %v460 = vpop.permute.xlu0 %459
    %461 = vrot.lane.b32.xlu0 %v453, 110
    %v462 = vpop.permute.xlu0 %461
    %v463 = vsel %vm255, %v458, %v460
    %v464 = vsel %vm255, %v460, %v462
    %v467 = vmax.f32 %v432, %v463
    %v468 = vmax.f32 %v433, %v464
    %469 = vrot.lane.b32.xlu0 %v451, 95
    %v470 = vpop.permute.xlu0 %469
    %471 = vrot.lane.b32.xlu0 %v452, 95
    %v472 = vpop.permute.xlu0 %471
    %473 = vrot.lane.b32.xlu0 %v453, 95
    %v474 = vpop.permute.xlu0 %473
    %v475 = vsel %vm312, %v470, %v472
    %v476 = vsel %vm312, %v472, %v474
    %v479 = vmax.f32 %v467, %v475
    %v480 = vmax.f32 %v468, %v476
    %481 = vrot.lane.b32.xlu0 %v451, 94
    %v482 = vpop.permute.xlu0 %481
    %483 = vrot.lane.b32.xlu0 %v452, 94
    %v484 = vpop.permute.xlu0 %483
    %485 = vrot.lane.b32.xlu0 %v453, 94
    %v486 = vpop.permute.xlu0 %485
    %v487 = vsel %vm350, %v482, %v484
    %v488 = vsel %vm350, %v484, %v486
    %v491 = vmax.f32 %v479, %v487
    %v492 = vmax.f32 %v480, %v488
    %v493 = vld [vmem:[%s3] sm:$0xff]
    %v494 = vld [vmem:[%s3 + $0x8] sm:$0xff]
    %v495 = vld [vmem:[%s3 + $0x10] sm:$0xff]
    %v496 = vld [vmem:[%s3 + $0x18] sm:$0xff]
    %v497 = vld [vmem:[%s3 + $0x20] sm:$0xff]
    %v498 = vld [vmem:[%s3 + $0x28] sm:$0xff]
    %v499 = vld [vmem:[%s3 + $0x30] sm:$0xff]
    %v500 = vld [vmem:[%s3 + $0x38] sm:$0xff]
    %v501 = vld [vmem:[%s3 + $0x40] sm:$0xff]
    %v502 = vld [vmem:[%s3 + $0x48] sm:$0xff]
    %v503 = vld [vmem:[%s3 + $0x50] sm:$0xff]
    %v504 = vld [vmem:[%s3 + $0x58] sm:$0xff]
    %v505 = vld [vmem:[%s3 + $0x60] sm:$0xff]
    %v506 = vld [vmem:[%s3 + $0x68] sm:$0xff]
    %v507 = vld [vmem:[%s3 + $0x70] sm:$0xff]
    %v508 = vld [vmem:[%s3 + $0x78] sm:$0xff]
    %v509 = vld [vmem:[%s3 + $0x80] sm:$0xff]
    %v510 = vld [vmem:[%s3 + $0x88] sm:$0xff]
    %v511 = vld [vmem:[%s3 + $0x90] sm:$0xff]
    %v512 = vld [vmem:[%s3 + $0x98] sm:$0xff]
    %v513 = vld [vmem:[%s3 + $0xa0] sm:$0xff]
    %v514 = vld [vmem:[%s3 + $0xa8] sm:$0xff]
    %v515 = vld [vmem:[%s3 + $0xb0] sm:$0xff]
    %v516 = vld [vmem:[%s3 + $0xb8] sm:$0xff]
    %v517 = vld [vmem:[%s3 + $0xc0] sm:$0xff]
    %v518 = vld [vmem:[%s3 + $0xc8] sm:$0xff]
    %v519 = vld [vmem:[%s3 + $0xd0] sm:$0xff]
    %v520 = vld [vmem:[%s3 + $0xd8] sm:$0xff]
    %v521 = vld [vmem:[%s3 + $0xe0] sm:$0xff]
    %v522 = vld [vmem:[%s3 + $0xe8] sm:$0xff]
    %v523 = vld [vmem:[%s3 + $0xf0] sm:$0xff]
    %v524 = vld [vmem:[%s3 + $0xf8] sm:$0xff]
    %525 = vmatprep.subr.mxu0 0.0
    %526 = vmatpush1.msra.mxu0 %v493
    %527 = vmatprep.subr.mxu0 0.0
    %528 = vmatpush1.msra.mxu0 %v494
    %529 = vmatprep.subr.mxu0 0.0
    %530 = vmatpush1.msra.mxu0 %v495
    %531 = vmatprep.subr.mxu0 0.0
    %532 = vmatpush1.msra.mxu0 %v496
    %533 = vmatprep.subr.mxu0 0.0
    %534 = vmatpush1.msra.mxu0 %v497
    %535 = vmatprep.subr.mxu0 0.0
    %536 = vmatpush1.msra.mxu0 %v498
    %537 = vmatprep.subr.mxu0 0.0
    %538 = vmatpush1.msra.mxu0 %v499
    %539 = vmatprep.subr.mxu0 0.0
    %540 = vmatpush1.msra.mxu0 %v500
    %541 = vmatprep.subr.mxu0 0.0
    %542 = vmatpush1.msra.mxu0 %v501
    %543 = vmatprep.subr.mxu0 0.0
    %544 = vmatpush1.msra.mxu0 %v502
    %545 = vmatprep.subr.mxu0 0.0
    %546 = vmatpush1.msra.mxu0 %v503
    %547 = vmatprep.subr.mxu0 0.0
    %548 = vmatpush1.msra.mxu0 %v504
    %549 = vmatprep.subr.mxu0 0.0
    %550 = vmatpush1.msra.mxu0 %v505
    %551 = vmatprep.subr.mxu0 0.0
    %552 = vmatpush1.msra.mxu0 %v506
    %553 = vmatprep.subr.mxu0 0.0
    %554 = vmatpush1.msra.mxu0 %v507
    %555 = vmatprep.subr.mxu0 0.0
    %556 = vmatpush1.msra.mxu0 %v508
    %557 = vmatprep.subr.mxu0 0.0
    %558 = vmatpush1.msra.mxu0 %v509
    %559 = vmatprep.subr.mxu0 0.0
    %560 = vmatpush1.msra.mxu0 %v510
    %561 = vmatprep.subr.mxu0 0.0
    %562 = vmatpush1.msra.mxu0 %v511
    %563 = vmatprep.subr.mxu0 0.0
    %564 = vmatpush1.msra.mxu0 %v512
    %565 = vmatprep.subr.mxu0 0.0
    %566 = vmatpush1.msra.mxu0 %v513
    %567 = vmatprep.subr.mxu0 0.0
    %568 = vmatpush1.msra.mxu0 %v514
    %569 = vmatprep.subr.mxu0 0.0
    %570 = vmatpush1.msra.mxu0 %v515
    %571 = vmatprep.subr.mxu0 0.0
    %572 = vmatpush1.msra.mxu0 %v516
    %573 = vmatprep.subr.mxu0 0.0
    %574 = vmatpush1.msra.mxu0 %v517
    %575 = vmatprep.subr.mxu0 0.0
    %576 = vmatpush1.msra.mxu0 %v518
    %577 = vmatprep.subr.mxu0 0.0
    %578 = vmatpush1.msra.mxu0 %v519
    %579 = vmatprep.subr.mxu0 0.0
    %580 = vmatpush1.msra.mxu0 %v520
    %581 = vmatprep.subr.mxu0 0.0
    %582 = vmatpush1.msra.mxu0 %v521
    %583 = vmatprep.subr.mxu0 0.0
    %584 = vmatpush1.msra.mxu0 %v522
    %585 = vmatprep.subr.mxu0 0.0
    %586 = vmatpush1.msra.mxu0 %v523
    %587 = vmatprep.subr.mxu0 0.0
    %588 = vmatpush1.msra.mxu0 %v524
    %589 = vmatprep.mubr.f32.mxu0 %v492
    %590 = vmatmul.mubr.f32.gmra.mrb[0].mxu0 %v491
    %v591 = vpop.f32.mrb[0].mxu0
    %v592 = vadd.f32 0.0, %v591
    %v593 = vpop.f32.mrb[0].mxu0
    %594 = vdwg.mxu0
    %vm595 = vcmask 72704
    %596 = vst.msk [vmem:[#allocation4] sm:$0xff] %vm595, 0.0
    %vm597 = vcmask 671304
    %598 = vst.msk [vmem:[#allocation4] sm:$0xff] %vm597, 0.0
    %600 = vrot.lane.b32.xlu0 %v592, 9
    %v601 = vpop.permute.xlu0 %600
    %vm603 = vcmask 597064
    %604 = vst.msk [vmem:[#allocation4] sm:$0xff] %vm603, %v601
    %v605 = vld [vmem:[#allocation4] sm:$0xff]
    %v606 = vld [vmem:[#allocation9] sm:$0x1]
    %v607 = vlaneseq
    %v608 = vshrl.u32 %v607, 7
    %v609 = vsub.s32 0, %v608
    %v610 = vrot.slane %v606, %v609
    %v611 = vmul.f32 %v605, %v610
    %vm612 = vcmask 523264
    %613 = vst.msk [vmem:[#allocation7] sm:$0xff] %vm612, %v611
    %v614 = vld [vmem:[#allocation4] sm:$0xff]
    %616 = vrot.lane.b32.xlu0 %v614, 127
    %v617 = vpop.permute.xlu0 %616
    %619 = vst.msk [vmem:[#allocation7 + $0x8] sm:$0xff] %vm612, %v617
    %v620 = vld [vmem:[#allocation4] sm:$0xff]
    %v621 = vld [vmem:[#allocation9 + $0x1] sm:$0x1]
    %v622 = vlaneseq
    %v623 = vshrl.u32 %v622, 7
    %v624 = vsub.s32 0, %v623
    %v625 = vrot.slane %v621, %v624
    %627 = vrot.lane.b32.xlu0 %v625, 2
    %v628 = vpop.permute.xlu0 %627
    %v630 = vmul.f32 %v620, %v628
    %632 = vrot.lane.b32.xlu0 %v630, 126
    %v633 = vpop.permute.xlu0 %632
    %635 = vst.msk [vmem:[#allocation7 + $0x10] sm:$0xff] %vm612, %v633
    %v636 = vld [vmem:[#allocation4] sm:$0xff]
    %v637 = vld [vmem:[#allocation9] sm:$0x1]
    %v638 = vlaneseq
    %v639 = vshrl.u32 %v638, 7
    %v640 = vsub.s32 0, %v639
    %v641 = vrot.slane %v637, %v640
    %643 = vrot.lane.b32.xlu0 %v641, 8
    %v644 = vpop.permute.xlu0 %643
    %v646 = vmul.f32 %v636, %v644
    %648 = vrot.lane.b32.xlu0 %v646, 120
    %v649 = vpop.permute.xlu0 %648
    %651 = vst.msk [vmem:[#allocation7 + $0x18] sm:$0xff] %vm612, %v649
    %v652 = vld [vmem:[#allocation4] sm:$0xff]
    %654 = vrot.lane.b32.xlu0 %v652, 119
    %v655 = vpop.permute.xlu0 %654
    %657 = vst.msk [vmem:[#allocation7 + $0x20] sm:$0xff] %vm612, %v655
    %v658 = vld [vmem:[#allocation4] sm:$0xff]
    %v659 = vld [vmem:[#allocation9 + $0x1] sm:$0x1]
    %v660 = vlaneseq
    %v661 = vshrl.u32 %v660, 7
    %v662 = vsub.s32 0, %v661
    %v663 = vrot.slane %v659, %v662
    %665 = vrot.lane.b32.xlu0 %v663, 10
    %v666 = vpop.permute.xlu0 %665
    %v668 = vmul.f32 %v658, %v666
    %670 = vrot.lane.b32.xlu0 %v668, 118
    %v671 = vpop.permute.xlu0 %670
    %673 = vst.msk [vmem:[#allocation7 + $0x28] sm:$0xff] %vm612, %v671
    %v674 = vld [vmem:[#allocation4] sm:$0xff]
    %v675 = vld [vmem:[#allocation9] sm:$0x1]
    %v676 = vlaneseq
    %v677 = vshrl.u32 %v676, 7
    %v678 = vsub.s32 0, %v677
    %v679 = vrot.slane %v675, %v678
    %681 = vrot.lane.b32.xlu0 %v679, 16
    %v682 = vpop.permute.xlu0 %681
    %v684 = vmul.f32 %v674, %v682
    %686 = vrot.lane.b32.xlu0 %v684, 112
    %v687 = vpop.permute.xlu0 %686
    %689 = vst.msk [vmem:[#allocation7 + $0x30] sm:$0xff] %vm612, %v687
    %v690 = vld [vmem:[#allocation4] sm:$0xff]
    %692 = vrot.lane.b32.xlu0 %v690, 111
    %v693 = vpop.permute.xlu0 %692
    %695 = vst.msk [vmem:[#allocation7 + $0x38] sm:$0xff] %vm612, %v693
    %v696 = vld [vmem:[#allocation4] sm:$0xff]
    %v697 = vld [vmem:[#allocation9 + $0x1] sm:$0x1]
    %v698 = vlaneseq
    %v699 = vshrl.u32 %v698, 7
    %v700 = vsub.s32 0, %v699
    %v701 = vrot.slane %v697, %v700
    %703 = vrot.lane.b32.xlu0 %v701, 18
    %v704 = vpop.permute.xlu0 %703
    %v706 = vmul.f32 %v696, %v704
    %708 = vrot.lane.b32.xlu0 %v706, 110
    %v709 = vpop.permute.xlu0 %708
    %711 = vst.msk [vmem:[#allocation7 + $0x40] sm:$0xff] %vm612, %v709
    %v712 = vld [vmem:[%s7] sm:$0xf]
    %v713 = vld [vmem:[%s7 + $0x4] sm:$0xf]
    %v714 = vld [vmem:[#allocation7] sm:$0xff]
    %v715 = vld [vmem:[#allocation7 + $0x8] sm:$0xff]
    %v716 = vld [vmem:[#allocation7 + $0x10] sm:$0xff]
    %v717 = vld [vmem:[#allocation7 + $0x18] sm:$0xff]
    %v718 = vld [vmem:[#allocation7 + $0x20] sm:$0xff]
    %v719 = vld [vmem:[#allocation7 + $0x28] sm:$0xff]
    %v720 = vld [vmem:[#allocation7 + $0x30] sm:$0xff]
    %v721 = vld [vmem:[#allocation7 + $0x38] sm:$0xff]
    %v722 = vld [vmem:[#allocation7 + $0x40] sm:$0xff]
    %v723 = vpack.c.bf16 %v715, %v714
    %v724 = vpack.c.bf16 %v717, %v716
    %v725 = vpack.c.bf16 %v719, %v718
    %v726 = vpack.c.bf16 %v721, %v720
    %v727 = vpack.c.bf16 %v722, %v722
    %v728 = vld [vmem:[%s8] sm:$0xff]
    %v729 = vld [vmem:[%s8 + $0x8] sm:$0xff]
    %731 = vset.pattern.permute.xlu0 0
    %732 = vperm.xlu0 %731, %v728
    %v733 = vpop.permute.xlu0 %732
    %736 = vset.pattern.permute.xlu0 0
    %737 = vperm.xlu0 %736, %v729
    %v738 = vpop.permute.xlu0 %737
    %v742 = vunpack.c.l.b16 %v712
    %v743 = vunpack.c.l.b16 %v713
    %v744 = vpack.c.b16 %v743, %v742
    %vm745 = vcmask 588800
    %v747 = vsel %vm745, %v744, 0
    %vm749 = vcmask 1043456
    %v751 = vsel %vm749, %v727, 0
    %753 = vmatprep.subr.bf16.mxu0 0
    %754 = vmatpush1.bf16.msra.mxu0 %v723
    %755 = vmatprep.subr.bf16.mxu0 0
    %756 = vmatpush1.bf16.msra.mxu0 %v724
    %757 = vmatprep.subr.bf16.mxu0 0
    %758 = vmatpush1.bf16.msra.mxu0 %v725
    %759 = vmatprep.subr.bf16.mxu0 0
    %760 = vmatpush1.bf16.msra.mxu0 %v726
    %761 = vmatprep.subr.bf16.mxu0 0
    %762 = vmatpush1.bf16.msra.mxu0 %v751
    %763 = vmatprep.subr.bf16.mxu0 0
    %764 = vmatpush1.bf16.msra.mxu0 0
    %765 = vmatprep.subr.bf16.mxu0 0
    %766 = vmatpush1.bf16.msra.mxu0 0
    %767 = vmatprep.subr.bf16.mxu0 0
    %768 = vmatpush1.bf16.msra.mxu0 0
    %769 = vmatprep.subr.bf16.mxu0 0
    %770 = vmatpush1.bf16.msra.mxu0 0
    %771 = vmatprep.subr.bf16.mxu0 0
    %772 = vmatpush1.bf16.msra.mxu0 0
    %773 = vmatprep.subr.bf16.mxu0 0
    %774 = vmatpush1.bf16.msra.mxu0 0
    %775 = vmatprep.subr.bf16.mxu0 0
    %776 = vmatpush1.bf16.msra.mxu0 0
    %777 = vmatprep.subr.bf16.mxu0 0
    %778 = vmatpush1.bf16.msra.mxu0 0
    %779 = vmatprep.subr.bf16.mxu0 0
    %780 = vmatpush1.bf16.msra.mxu0 0
    %781 = vmatprep.subr.bf16.mxu0 0
    %782 = vmatpush1.bf16.msra.mxu0 0
    %783 = vmatprep.subr.bf16.mxu0 0
    %784 = vmatpush1.bf16.msra.mxu0 0
    %785 = vmatprep.mubr.bf16.mxu0 0
    %786 = vmatmul.mubr.bf16.gmra.mrb[0].mxu0 %v747
    %v787 = vpop.f32.mrb[0].mxu0
    %v788 = vadd.f32 %v733, %v787
    %v789 = vpop.f32.mrb[0].mxu0
    %v790 = vpop.f32.mrb[0].mxu0
    %v791 = vadd.f32 %v738, %v790
    %v792 = vpop.f32.mrb[0].mxu0
    %793 = vdwg.mxu0
    %v794 = vmax.f32 %v788, 0.0
    %v795 = vmax.f32 %v791, 0.0
    %v796 = vld [vmem:[#allocation11] sm:$0xff]
    %v797 = vld [vmem:[#allocation11 + $0x8] sm:$0xff]
    %v798 = vld [vmem:[#allocation11 + $0x10] sm:$0xff]
    %v799 = vld [vmem:[#allocation11 + $0x18] sm:$0xff]
    %v800 = vld [vmem:[#allocation11 + $0x20] sm:$0xff]
    %v801 = vld [vmem:[#allocation11 + $0x28] sm:$0xff]
    %v802 = vld [vmem:[#allocation11 + $0x30] sm:$0xff]
    %v803 = vld [vmem:[#allocation11 + $0x38] sm:$0xff]
    %v804 = vld [vmem:[#allocation11 + $0x40] sm:$0xff]
    %v805 = vld [vmem:[#allocation11 + $0x48] sm:$0xff]
    %v806 = vld [vmem:[#allocation11 + $0x50] sm:$0xff]
    %v807 = vld [vmem:[#allocation11 + $0x58] sm:$0xff]
    %v808 = vld [vmem:[#allocation11 + $0x60] sm:$0xff]
    %v809 = vld [vmem:[#allocation11 + $0x68] sm:$0xff]
    %v810 = vld [vmem:[#allocation11 + $0x70] sm:$0xff]
    %v811 = vld [vmem:[#allocation11 + $0x78] sm:$0xff]
    %v813 = vsel %vm612, %v794, 0
    %v816 = vsel %vm612, %v795, 0
    %818 = vmatprep.subr.mxu0 %v797
    %819 = vmatpush1.msra.mxu0 %v796
    %820 = vmatprep.subr.mxu0 %v799
    %821 = vmatpush1.msra.mxu0 %v798
    %822 = vmatprep.subr.mxu0 %v801
    %823 = vmatpush1.msra.mxu0 %v800
    %824 = vmatprep.subr.mxu0 %v803
    %825 = vmatpush1.msra.mxu0 %v802
    %826 = vmatprep.subr.mxu0 %v805
    %827 = vmatpush1.msra.mxu0 %v804
    %828 = vmatprep.subr.mxu0 %v807
    %829 = vmatpush1.msra.mxu0 %v806
    %830 = vmatprep.subr.mxu0 %v809
    %831 = vmatpush1.msra.mxu0 %v808
    %832 = vmatprep.subr.mxu0 %v811
    %833 = vmatpush1.msra.mxu0 %v810
    %834 = vmatprep.subr.mxu0 0.0
    %835 = vmatpush1.msra.mxu0 0.0
    %836 = vmatprep.subr.mxu0 0.0
    %837 = vmatpush1.msra.mxu0 0.0
    %838 = vmatprep.subr.mxu0 0.0
    %839 = vmatpush1.msra.mxu0 0.0
    %840 = vmatprep.subr.mxu0 0.0
    %841 = vmatpush1.msra.mxu0 0.0
    %842 = vmatprep.subr.mxu0 0.0
    %843 = vmatpush1.msra.mxu0 0.0
    %844 = vmatprep.subr.mxu0 0.0
    %845 = vmatpush1.msra.mxu0 0.0
    %846 = vmatprep.subr.mxu0 0.0
    %847 = vmatpush1.msra.mxu0 0.0
    %848 = vmatprep.subr.mxu0 0.0
    %849 = vmatpush1.msra.mxu0 0.0
    %850 = vmatprep.subr.mxu0 0.0
    %851 = vmatpush1.msra.mxu0 0.0
    %852 = vmatprep.subr.mxu0 0.0
    %853 = vmatpush1.msra.mxu0 0.0
    %854 = vmatprep.subr.mxu0 0.0
    %855 = vmatpush1.msra.mxu0 0.0
    %856 = vmatprep.subr.mxu0 0.0
    %857 = vmatpush1.msra.mxu0 0.0
    %858 = vmatprep.subr.mxu0 0.0
    %859 = vmatpush1.msra.mxu0 0.0
    %860 = vmatprep.subr.mxu0 0.0
    %861 = vmatpush1.msra.mxu0 0.0
    %862 = vmatprep.subr.mxu0 0.0
    %863 = vmatpush1.msra.mxu0 0.0
    %864 = vmatprep.subr.mxu0 0.0
    %865 = vmatpush1.msra.mxu0 0.0
    %866 = vmatprep.subr.mxu0 0.0
    %867 = vmatpush1.msra.mxu0 0.0
    %868 = vmatprep.subr.mxu0 0.0
    %869 = vmatpush1.msra.mxu0 0.0
    %870 = vmatprep.subr.mxu0 0.0
    %871 = vmatpush1.msra.mxu0 0.0
    %872 = vmatprep.subr.mxu0 0.0
    %873 = vmatpush1.msra.mxu0 0.0
    %874 = vmatprep.subr.mxu0 0.0
    %875 = vmatpush1.msra.mxu0 0.0
    %876 = vmatprep.subr.mxu0 0.0
    %877 = vmatpush1.msra.mxu0 0.0
    %878 = vmatprep.subr.mxu0 0.0
    %879 = vmatpush1.msra.mxu0 0.0
    %880 = vmatprep.subr.mxu0 0.0
    %881 = vmatpush1.msra.mxu0 0.0
    %882 = vmatprep.mubr.f32.mxu0 0.0
    %883 = vmatmul.mubr.f32.gmra.mrb[0].mxu0 %v813
    %v884 = vpop.f32.mrb[0].mxu0
    %v885 = vadd.f32 0.0, %v884
    %v886 = vpop.f32.mrb[0].mxu0
    %v887 = vadd.f32 0.0, %v886
    %888 = vmatprep.mubr.f32.mxu0 0.0
    %889 = vmatmul.mubr.f32.gmra.mrb[0].mxu0 %v816
    %v890 = vpop.f32.mrb[0].mxu0
    %v891 = vadd.f32 0.0, %v890
    %v892 = vpop.f32.mrb[0].mxu0
    %v893 = vadd.f32 0.0, %v892
    %894 = vdwg.mxu0
    %895 = vst.msk [vmem:[#allocation5] sm:$0xff] %vm80, 0.0
    %896 = vst.msk [vmem:[#allocation5 + $0x18] sm:$0xff] %vm80, 0.0
    %897 = vst.msk [vmem:[#allocation5 + $0x10] sm:$0xff] %vm435, 0.0
    %898 = vst.msk [vmem:[#allocation5 + $0x28] sm:$0xff] %vm435, 0.0
    %903 = vrot.lane.b32.xlu0 %v885, 17
    %v904 = vpop.permute.xlu0 %903
    %905 = vrot.lane.b32.xlu0 %v887, 17
    %v906 = vpop.permute.xlu0 %905
    %907 = vrot.lane.b32.xlu0 %v891, 17
    %v908 = vpop.permute.xlu0 %907
    %909 = vrot.lane.b32.xlu0 %v893, 17
    %v910 = vpop.permute.xlu0 %909
    %v911 = vsel %vm80, %v904, %v906
    %v912 = vsel %vm80, %v908, %v910
    %919 = vst.msk [vmem:[#allocation5] sm:$0xff] %vm447, %v904
    %920 = vst [vmem:[#allocation5 + $0x8] sm:$0xff] %v911
    %921 = vst.msk [vmem:[#allocation5 + $0x10] sm:$0xff] %vm80, %v906
    %922 = vst.msk [vmem:[#allocation5 + $0x18] sm:$0xff] %vm447, %v908
    %923 = vst [vmem:[#allocation5 + $0x20] sm:$0xff] %v912
    %924 = vst.msk [vmem:[#allocation5 + $0x28] sm:$0xff] %vm80, %v910
    %v925 = vld [vmem:[#allocation5] sm:$0xff]
    %v926 = vld [vmem:[#allocation5 + $0x8] sm:$0xff]
    %v927 = vld [vmem:[#allocation5 + $0x18] sm:$0xff]
    %v928 = vld [vmem:[#allocation5 + $0x20] sm:$0xff]
    %v929 = vld [vmem:[%s1] ss:$2 sm:$0x3]
    %v931 = vlaneseq
    %v932 = vshrl.u32 %v931, 7
    %v933 = vsub.s32 0, %v932
    %v934 = vrot.slane %v929, %v933
    %v935 = vlaneseq
    %v936 = vshrl.u32 %v935, 7
    %v937 = vsub.s32 1, %v936
    %v938 = vrot.slane %v929, %v937
    %v941 = vmul.f32 %v925, %v934
    %v942 = vmul.f32 %v926, %v938
    %v943 = vmul.f32 %v927, %v934
    %v944 = vmul.f32 %v928, %v938
    %945 = vst [vmem:[#allocation8] sm:$0xff] %v941
    %946 = vst [vmem:[#allocation8 + $0x8] sm:$0xff] %v942
    %947 = vst [vmem:[#allocation8 + $0x10] sm:$0xff] %v943
    %948 = vst [vmem:[#allocation8 + $0x18] sm:$0xff] %v944
    %v949 = vld [vmem:[#allocation5] sm:$0xff]
    %v950 = vld [vmem:[#allocation5 + $0x8] sm:$0xff]
    %v951 = vld [vmem:[#allocation5 + $0x10] sm:$0xff]
    %v952 = vld [vmem:[#allocation5 + $0x18] sm:$0xff]
    %v953 = vld [vmem:[#allocation5 + $0x20] sm:$0xff]
    %v954 = vld [vmem:[#allocation5 + $0x28] sm:$0xff]
    %961 = vrot.lane.b32.xlu0 %v949, 127
    %v962 = vpop.permute.xlu0 %961
    %963 = vrot.lane.b32.xlu0 %v950, 127
    %v964 = vpop.permute.xlu0 %963
    %965 = vrot.lane.b32.xlu0 %v951, 127
    %v966 = vpop.permute.xlu0 %965
    %967 = vrot.lane.b32.xlu0 %v952, 127
    %v968 = vpop.permute.xlu0 %967
    %969 = vrot.lane.b32.xlu0 %v953, 127
    %v970 = vpop.permute.xlu0 %969
    %971 = vrot.lane.b32.xlu0 %v954, 127
    %v972 = vpop.permute.xlu0 %971
    %v973 = vsel %vm120, %v962, %v964
    %v974 = vsel %vm120, %v964, %v966
    %v975 = vsel %vm120, %v968, %v970
    %v976 = vsel %vm120, %v970, %v972
    %981 = vst [vmem:[#allocation8 + $0x30] sm:$0xff] %v973
    %982 = vst [vmem:[#allocation8 + $0x38] sm:$0xff] %v974
    %983 = vst [vmem:[#allocation8 + $0x40] sm:$0xff] %v975
    %984 = vst [vmem:[#allocation8 + $0x48] sm:$0xff] %v976
    %v985 = vld [vmem:[#allocation5] sm:$0xff]
    %v986 = vld [vmem:[#allocation5 + $0x8] sm:$0xff]
    %v987 = vld [vmem:[#allocation5 + $0x10] sm:$0xff]
    %v988 = vld [vmem:[#allocation5 + $0x18] sm:$0xff]
    %v989 = vld [vmem:[#allocation5 + $0x20] sm:$0xff]
    %v990 = vld [vmem:[#allocation5 + $0x28] sm:$0xff]
    %v991 = vld [vmem:[%s129] ss:$2 sm:$0x3]
    %v993 = vlaneseq
    %v994 = vshrl.u32 %v993, 7
    %v995 = vsub.s32 0, %v994
    %v996 = vrot.slane %v991, %v995
    %v997 = vlaneseq
    %v998 = vshrl.u32 %v997, 7
    %v999 = vsub.s32 1, %v998
    %v1000 = vrot.slane %v991, %v999
    %1001 = vrot.lane.b32.xlu0 %v996, 2
    %v1002 = vpop.permute.xlu0 %1001
    %1003 = vrot.lane.b32.xlu0 %v1000, 2
    %v1004 = vpop.permute.xlu0 %1003
    %v1005 = vsel %vm144, %v1002, %v1004
    %v1009 = vmul.f32 %v985, %v1002
    %v1010 = vmul.f32 %v986, %v1005
    %v1011 = vmul.f32 %v987, %v1004
    %v1012 = vmul.f32 %v988, %v1002
    %v1013 = vmul.f32 %v989, %v1005
    %v1014 = vmul.f32 %v990, %v1004
    %1021 = vrot.lane.b32.xlu0 %v1009, 126
    %v1022 = vpop.permute.xlu0 %1021
    %1023 = vrot.lane.b32.xlu0 %v1010, 126
    %v1024 = vpop.permute.xlu0 %1023
    %1025 = vrot.lane.b32.xlu0 %v1011, 126
    %v1026 = vpop.permute.xlu0 %1025
    %1027 = vrot.lane.b32.xlu0 %v1012, 126
    %v1028 = vpop.permute.xlu0 %1027
    %1029 = vrot.lane.b32.xlu0 %v1013, 126
    %v1030 = vpop.permute.xlu0 %1029
    %1031 = vrot.lane.b32.xlu0 %v1014, 126
    %v1032 = vpop.permute.xlu0 %1031
    %v1033 = vsel %vm159, %v1022, %v1024
    %v1034 = vsel %vm159, %v1024, %v1026
    %v1035 = vsel %vm159, %v1028, %v1030
    %v1036 = vsel %vm159, %v1030, %v1032
    %1041 = vst [vmem:[#allocation8 + $0x60] sm:$0xff] %v1033
    %1042 = vst [vmem:[#allocation8 + $0x68] sm:$0xff] %v1034
    %1043 = vst [vmem:[#allocation8 + $0x70] sm:$0xff] %v1035
    %1044 = vst [vmem:[#allocation8 + $0x78] sm:$0xff] %v1036
    %v1045 = vld [vmem:[#allocation5] sm:$0xff]
    %v1046 = vld [vmem:[#allocation5 + $0x8] sm:$0xff]
    %v1047 = vld [vmem:[#allocation5 + $0x10] sm:$0xff]
    %v1048 = vld [vmem:[#allocation5 + $0x18] sm:$0xff]
    %v1049 = vld [vmem:[#allocation5 + $0x20] sm:$0xff]
    %v1050 = vld [vmem:[#allocation5 + $0x28] sm:$0xff]
    %v1051 = vld [vmem:[%s1] ss:$2 sm:$0x3]
    %v1053 = vlaneseq
    %v1054 = vshrl.u32 %v1053, 7
    %v1055 = vsub.s32 0, %v1054
    %v1056 = vrot.slane %v1051, %v1055
    %v1057 = vlaneseq
    %v1058 = vshrl.u32 %v1057, 7
    %v1059 = vsub.s32 1, %v1058
    %v1060 = vrot.slane %v1051, %v1059
    %1061 = vrot.lane.b32.xlu0 %v1056, 16
    %v1062 = vpop.permute.xlu0 %1061
    %1063 = vrot.lane.b32.xlu0 %v1060, 16
    %v1064 = vpop.permute.xlu0 %1063
    %v1065 = vsel %vm182, %v1062, %v1064
    %v1069 = vmul.f32 %v1045, %v1062
    %v1070 = vmul.f32 %v1046, %v1065
    %v1071 = vmul.f32 %v1047, %v1064
    %v1072 = vmul.f32 %v1048, %v1062
    %v1073 = vmul.f32 %v1049, %v1065
    %v1074 = vmul.f32 %v1050, %v1064
    %1081 = vrot.lane.b32.xlu0 %v1069, 112
    %v1082 = vpop.permute.xlu0 %1081
    %1083 = vrot.lane.b32.xlu0 %v1070, 112
    %v1084 = vpop.permute.xlu0 %1083
    %1085 = vrot.lane.b32.xlu0 %v1071, 112
    %v1086 = vpop.permute.xlu0 %1085
    %1087 = vrot.lane.b32.xlu0 %v1072, 112
    %v1088 = vpop.permute.xlu0 %1087
    %1089 = vrot.lane.b32.xlu0 %v1073, 112
    %v1090 = vpop.permute.xlu0 %1089
    %1091 = vrot.lane.b32.xlu0 %v1074, 112
    %v1092 = vpop.permute.xlu0 %1091
    %v1093 = vsel %vm198, %v1082, %v1084
    %v1094 = vsel %vm198, %v1084, %v1086
    %v1095 = vsel %vm198, %v1088, %v1090
    %v1096 = vsel %vm198, %v1090, %v1092
    %1101 = vst [vmem:[#allocation8 + $0x90] sm:$0xff] %v1093
    %1102 = vst [vmem:[#allocation8 + $0x98] sm:$0xff] %v1094
    %1103 = vst [vmem:[#allocation8 + $0xa0] sm:$0xff] %v1095
    %1104 = vst [vmem:[#allocation8 + $0xa8] sm:$0xff] %v1096
    %v1105 = vld [vmem:[#allocation5] sm:$0xff]
    %v1106 = vld [vmem:[#allocation5 + $0x8] sm:$0xff]
    %v1107 = vld [vmem:[#allocation5 + $0x10] sm:$0xff]
    %v1108 = vld [vmem:[#allocation5 + $0x18] sm:$0xff]
    %v1109 = vld [vmem:[#allocation5 + $0x20] sm:$0xff]
    %v1110 = vld [vmem:[#allocation5 + $0x28] sm:$0xff]
    %1117 = vrot.lane.b32.xlu0 %v1105, 111
    %v1118 = vpop.permute.xlu0 %1117
    %1119 = vrot.lane.b32.xlu0 %v1106, 111
    %v1120 = vpop.permute.xlu0 %1119
    %1121 = vrot.lane.b32.xlu0 %v1107, 111
    %v1122 = vpop.permute.xlu0 %1121
    %1123 = vrot.lane.b32.xlu0 %v1108, 111
    %v1124 = vpop.permute.xlu0 %1123
    %1125 = vrot.lane.b32.xlu0 %v1109, 111
    %v1126 = vpop.permute.xlu0 %1125
    %1127 = vrot.lane.b32.xlu0 %v1110, 111
    %v1128 = vpop.permute.xlu0 %1127
    %v1129 = vsel %vm216, %v1118, %v1120
    %v1130 = vsel %vm216, %v1120, %v1122
    %v1131 = vsel %vm216, %v1124, %v1126
    %v1132 = vsel %vm216, %v1126, %v1128
    %1137 = vst [vmem:[#allocation8 + $0xc0] sm:$0xff] %v1129
    %1138 = vst [vmem:[#allocation8 + $0xc8] sm:$0xff] %v1130
    %1139 = vst [vmem:[#allocation8 + $0xd0] sm:$0xff] %v1131
    %1140 = vst [vmem:[#allocation8 + $0xd8] sm:$0xff] %v1132
    %v1141 = vld [vmem:[#allocation5] sm:$0xff]
    %v1142 = vld [vmem:[#allocation5 + $0x8] sm:$0xff]
    %v1143 = vld [vmem:[#allocation5 + $0x10] sm:$0xff]
    %v1144 = vld [vmem:[#allocation5 + $0x18] sm:$0xff]
    %v1145 = vld [vmem:[#allocation5 + $0x20] sm:$0xff]
    %v1146 = vld [vmem:[#allocation5 + $0x28] sm:$0xff]
    %v1147 = vld [vmem:[%s129] ss:$2 sm:$0x3]
    %v1149 = vlaneseq
    %v1150 = vshrl.u32 %v1149, 7
    %v1151 = vsub.s32 0, %v1150
    %v1152 = vrot.slane %v1147, %v1151
    %v1153 = vlaneseq
    %v1154 = vshrl.u32 %v1153, 7
    %v1155 = vsub.s32 1, %v1154
    %v1156 = vrot.slane %v1147, %v1155
    %1157 = vrot.lane.b32.xlu0 %v1152, 18
    %v1158 = vpop.permute.xlu0 %1157
    %1159 = vrot.lane.b32.xlu0 %v1156, 18
    %v1160 = vpop.permute.xlu0 %1159
    %v1161 = vsel %vm239, %v1158, %v1160
    %v1165 = vmul.f32 %v1141, %v1158
    %v1166 = vmul.f32 %v1142, %v1161
    %v1167 = vmul.f32 %v1143, %v1160
    %v1168 = vmul.f32 %v1144, %v1158
    %v1169 = vmul.f32 %v1145, %v1161
    %v1170 = vmul.f32 %v1146, %v1160
    %1177 = vrot.lane.b32.xlu0 %v1165, 110
    %v1178 = vpop.permute.xlu0 %1177
    %1179 = vrot.lane.b32.xlu0 %v1166, 110
    %v1180 = vpop.permute.xlu0 %1179
    %1181 = vrot.lane.b32.xlu0 %v1167, 110
    %v1182 = vpop.permute.xlu0 %1181
    %1183 = vrot.lane.b32.xlu0 %v1168, 110
    %v1184 = vpop.permute.xlu0 %1183
    %1185 = vrot.lane.b32.xlu0 %v1169, 110
    %v1186 = vpop.permute.xlu0 %1185
    %1187 = vrot.lane.b32.xlu0 %v1170, 110
    %v1188 = vpop.permute.xlu0 %1187
    %v1189 = vsel %vm255, %v1178, %v1180
    %v1190 = vsel %vm255, %v1180, %v1182
    %v1191 = vsel %vm255, %v1184, %v1186
    %v1192 = vsel %vm255, %v1186, %v1188
    %1197 = vst [vmem:[#allocation8 + $0xf0] sm:$0xff] %v1189
    %1198 = vst [vmem:[#allocation8 + $0xf8] sm:$0xff] %v1190
    %1199 = vst [vmem:[#allocation8 + $0x100] sm:$0xff] %v1191
    %1200 = vst [vmem:[#allocation8 + $0x108] sm:$0xff] %v1192
    %v1201 = vld [vmem:[#allocation5] sm:$0xff]
    %v1202 = vld [vmem:[#allocation5 + $0x8] sm:$0xff]
    %v1203 = vld [vmem:[#allocation5 + $0x10] sm:$0xff]
    %v1204 = vld [vmem:[#allocation5 + $0x18] sm:$0xff]
    %v1205 = vld [vmem:[#allocation5 + $0x20] sm:$0xff]
    %v1206 = vld [vmem:[#allocation5 + $0x28] sm:$0xff]
    %v1207 = vld [vmem:[%s1] ss:$2 sm:$0x3]
    %v1209 = vlaneseq
    %v1210 = vshrl.u32 %v1209, 7
    %v1211 = vsub.s32 0, %v1210
    %v1212 = vrot.slane %v1207, %v1211
    %v1213 = vlaneseq
    %v1214 = vshrl.u32 %v1213, 7
    %v1215 = vsub.s32 1, %v1214
    %v1216 = vrot.slane %v1207, %v1215
    %1217 = vrot.lane.b32.xlu0 %v1212, 32
    %v1218 = vpop.permute.xlu0 %1217
    %1219 = vrot.lane.b32.xlu0 %v1216, 32
    %v1220 = vpop.permute.xlu0 %1219
    %v1221 = vsel %vm278, %v1218, %v1220
    %v1225 = vmul.f32 %v1201, %v1218
    %v1226 = vmul.f32 %v1202, %v1221
    %v1227 = vmul.f32 %v1203, %v1220
    %v1228 = vmul.f32 %v1204, %v1218
    %v1229 = vmul.f32 %v1205, %v1221
    %v1230 = vmul.f32 %v1206, %v1220
    %1237 = vrot.lane.b32.xlu0 %v1225, 96
    %v1238 = vpop.permute.xlu0 %1237
    %1239 = vrot.lane.b32.xlu0 %v1226, 96
    %v1240 = vpop.permute.xlu0 %1239
    %1241 = vrot.lane.b32.xlu0 %v1227, 96
    %v1242 = vpop.permute.xlu0 %1241
    %1243 = vrot.lane.b32.xlu0 %v1228, 96
    %v1244 = vpop.permute.xlu0 %1243
    %1245 = vrot.lane.b32.xlu0 %v1229, 96
    %v1246 = vpop.permute.xlu0 %1245
    %1247 = vrot.lane.b32.xlu0 %v1230, 96
    %v1248 = vpop.permute.xlu0 %1247
    %v1249 = vsel %vm293, %v1238, %v1240
    %v1250 = vsel %vm293, %v1240, %v1242
    %v1251 = vsel %vm293, %v1244, %v1246
    %v1252 = vsel %vm293, %v1246, %v1248
    %1257 = vst [vmem:[#allocation8 + $0x120] sm:$0xff] %v1249
    %1258 = vst [vmem:[#allocation8 + $0x128] sm:$0xff] %v1250
    %1259 = vst [vmem:[#allocation8 + $0x130] sm:$0xff] %v1251
    %1260 = vst [vmem:[#allocation8 + $0x138] sm:$0xff] %v1252
    %v1261 = vld [vmem:[#allocation5] sm:$0xff]
    %v1262 = vld [vmem:[#allocation5 + $0x8] sm:$0xff]
    %v1263 = vld [vmem:[#allocation5 + $0x10] sm:$0xff]
    %v1264 = vld [vmem:[#allocation5 + $0x18] sm:$0xff]
    %v1265 = vld [vmem:[#allocation5 + $0x20] sm:$0xff]
    %v1266 = vld [vmem:[#allocation5 + $0x28] sm:$0xff]
    %1273 = vrot.lane.b32.xlu0 %v1261, 95
    %v1274 = vpop.permute.xlu0 %1273
    %1275 = vrot.lane.b32.xlu0 %v1262, 95
    %v1276 = vpop.permute.xlu0 %1275
    %1277 = vrot.lane.b32.xlu0 %v1263, 95
    %v1278 = vpop.permute.xlu0 %1277
    %1279 = vrot.lane.b32.xlu0 %v1264, 95
    %v1280 = vpop.permute.xlu0 %1279
    %1281 = vrot.lane.b32.xlu0 %v1265, 95
    %v1282 = vpop.permute.xlu0 %1281
    %1283 = vrot.lane.b32.xlu0 %v1266, 95
    %v1284 = vpop.permute.xlu0 %1283
    %v1285 = vsel %vm312, %v1274, %v1276
    %v1286 = vsel %vm312, %v1276, %v1278
    %v1287 = vsel %vm312, %v1280, %v1282
    %v1288 = vsel %vm312, %v1282, %v1284
    %1293 = vst [vmem:[#allocation8 + $0x150] sm:$0xff] %v1285
    %1294 = vst [vmem:[#allocation8 + $0x158] sm:$0xff] %v1286
    %1295 = vst [vmem:[#allocation8 + $0x160] sm:$0xff] %v1287
    %1296 = vst [vmem:[#allocation8 + $0x168] sm:$0xff] %v1288
    %v1297 = vld [vmem:[#allocation5] sm:$0xff]
    %v1298 = vld [vmem:[#allocation5 + $0x8] sm:$0xff]
    %v1299 = vld [vmem:[#allocation5 + $0x10] sm:$0xff]
    %v1300 = vld [vmem:[#allocation5 + $0x18] sm:$0xff]
    %v1301 = vld [vmem:[#allocation5 + $0x20] sm:$0xff]
    %v1302 = vld [vmem:[#allocation5 + $0x28] sm:$0xff]
    %v1303 = vld [vmem:[%s129] ss:$2 sm:$0x3]
    %v1305 = vlaneseq
    %v1306 = vshrl.u32 %v1305, 7
    %v1307 = vsub.s32 0, %v1306
    %v1308 = vrot.slane %v1303, %v1307
    %v1309 = vlaneseq
    %v1310 = vshrl.u32 %v1309, 7
    %v1311 = vsub.s32 1, %v1310
    %v1312 = vrot.slane %v1303, %v1311
    %1313 = vrot.lane.b32.xlu0 %v1308, 34
    %v1314 = vpop.permute.xlu0 %1313
    %1315 = vrot.lane.b32.xlu0 %v1312, 34
    %v1316 = vpop.permute.xlu0 %1315
    %v1317 = vsel %vm335, %v1314, %v1316
    %v1321 = vmul.f32 %v1297, %v1314
    %v1322 = vmul.f32 %v1298, %v1317
    %v1323 = vmul.f32 %v1299, %v1316
    %v1324 = vmul.f32 %v1300, %v1314
    %v1325 = vmul.f32 %v1301, %v1317
    %v1326 = vmul.f32 %v1302, %v1316
    %1333 = vrot.lane.b32.xlu0 %v1321, 94
    %v1334 = vpop.permute.xlu0 %1333
    %1335 = vrot.lane.b32.xlu0 %v1322, 94
    %v1336 = vpop.permute.xlu0 %1335
    %1337 = vrot.lane.b32.xlu0 %v1323, 94
    %v1338 = vpop.permute.xlu0 %1337
    %1339 = vrot.lane.b32.xlu0 %v1324, 94
    %v1340 = vpop.permute.xlu0 %1339
    %1341 = vrot.lane.b32.xlu0 %v1325, 94
    %v1342 = vpop.permute.xlu0 %1341
    %1343 = vrot.lane.b32.xlu0 %v1326, 94
    %v1344 = vpop.permute.xlu0 %1343
    %v1345 = vsel %vm350, %v1334, %v1336
    %v1346 = vsel %vm350, %v1336, %v1338
    %v1347 = vsel %vm350, %v1340, %v1342
    %v1348 = vsel %vm350, %v1342, %v1344
    %1353 = vst [vmem:[#allocation8 + $0x180] sm:$0xff] %v1345
    %1354 = vst [vmem:[#allocation8 + $0x188] sm:$0xff] %v1346
    %1355 = vst [vmem:[#allocation8 + $0x190] sm:$0xff] %v1347
    %1356 = vst [vmem:[#allocation8 + $0x198] sm:$0xff] %v1348
    %v1357 = vld [vmem:[#allocation3] sm:$0xff]
    %v1358 = vld [vmem:[#allocation3 + $0x8] sm:$0xff]
    %v1359 = vld [vmem:[%s1] ss:$2 sm:$0x3]
    %v1361 = vlaneseq
    %v1362 = vshrl.u32 %v1361, 7
    %v1363 = vsub.s32 0, %v1362
    %v1364 = vrot.slane %v1359, %v1363
    %v1365 = vlaneseq
    %v1366 = vshrl.u32 %v1365, 7
    %v1367 = vsub.s32 1, %v1366
    %v1368 = vrot.slane %v1359, %v1367
    %v1371 = vmul.f32 %v1357, %v1364
    %v1372 = vmul.f32 %v1358, %v1368
    %1373 = vst [vmem:[#allocation8 + $0x20] sm:$0xff] %v1371
    %1374 = vst [vmem:[#allocation8 + $0x28] sm:$0xff] %v1372
    %v1375 = vld [vmem:[#allocation3] sm:$0xff]
    %v1376 = vld [vmem:[#allocation3 + $0x8] sm:$0xff]
    %v1377 = vld [vmem:[#allocation3 + $0x10] sm:$0xff]
    %1381 = vrot.lane.b32.xlu0 %v1375, 127
    %v1382 = vpop.permute.xlu0 %1381
    %1383 = vrot.lane.b32.xlu0 %v1376, 127
    %v1384 = vpop.permute.xlu0 %1383
    %1385 = vrot.lane.b32.xlu0 %v1377, 127
    %v1386 = vpop.permute.xlu0 %1385
    %v1387 = vsel %vm120, %v1382, %v1384
    %v1388 = vsel %vm120, %v1384, %v1386
    %1391 = vst [vmem:[#allocation8 + $0x50] sm:$0xff] %v1387
    %1392 = vst [vmem:[#allocation8 + $0x58] sm:$0xff] %v1388
    %v1393 = vld [vmem:[#allocation3] sm:$0xff]
    %v1394 = vld [vmem:[#allocation3 + $0x8] sm:$0xff]
    %v1395 = vld [vmem:[#allocation3 + $0x10] sm:$0xff]
    %v1396 = vld [vmem:[%s129] ss:$2 sm:$0x3]
    %v1398 = vlaneseq
    %v1399 = vshrl.u32 %v1398, 7
    %v1400 = vsub.s32 0, %v1399
    %v1401 = vrot.slane %v1396, %v1400
    %v1402 = vlaneseq
    %v1403 = vshrl.u32 %v1402, 7
    %v1404 = vsub.s32 1, %v1403
    %v1405 = vrot.slane %v1396, %v1404
    %1406 = vrot.lane.b32.xlu0 %v1401, 2
    %v1407 = vpop.permute.xlu0 %1406
    %1408 = vrot.lane.b32.xlu0 %v1405, 2
    %v1409 = vpop.permute.xlu0 %1408
    %v1410 = vsel %vm144, %v1407, %v1409
    %v1414 = vmul.f32 %v1393, %v1407
    %v1415 = vmul.f32 %v1394, %v1410
    %v1416 = vmul.f32 %v1395, %v1409
    %1420 = vrot.lane.b32.xlu0 %v1414, 126
    %v1421 = vpop.permute.xlu0 %1420
    %1422 = vrot.lane.b32.xlu0 %v1415, 126
    %v1423 = vpop.permute.xlu0 %1422
    %1424 = vrot.lane.b32.xlu0 %v1416, 126
    %v1425 = vpop.permute.xlu0 %1424
    %v1426 = vsel %vm159, %v1421, %v1423
    %v1427 = vsel %vm159, %v1423, %v1425
    %1430 = vst [vmem:[#allocation8 + $0x80] sm:$0xff] %v1426
    %1431 = vst [vmem:[#allocation8 + $0x88] sm:$0xff] %v1427
    %v1432 = vld [vmem:[#allocation3] sm:$0xff]
    %v1433 = vld [vmem:[#allocation3 + $0x8] sm:$0xff]
    %v1434 = vld [vmem:[#allocation3 + $0x10] sm:$0xff]
    %v1435 = vld [vmem:[%s1] ss:$2 sm:$0x3]
    %v1437 = vlaneseq
    %v1438 = vshrl.u32 %v1437, 7
    %v1439 = vsub.s32 0, %v1438
    %v1440 = vrot.slane %v1435, %v1439
    %v1441 = vlaneseq
    %v1442 = vshrl.u32 %v1441, 7
    %v1443 = vsub.s32 1, %v1442
    %v1444 = vrot.slane %v1435, %v1443
    %1445 = vrot.lane.b32.xlu0 %v1440, 16
    %v1446 = vpop.permute.xlu0 %1445
    %1447 = vrot.lane.b32.xlu0 %v1444, 16
    %v1448 = vpop.permute.xlu0 %1447
    %v1449 = vsel %vm182, %v1446, %v1448
    %v1453 = vmul.f32 %v1432, %v1446
    %v1454 = vmul.f32 %v1433, %v1449
    %v1455 = vmul.f32 %v1434, %v1448
    %1459 = vrot.lane.b32.xlu0 %v1453, 112
    %v1460 = vpop.permute.xlu0 %1459
    %1461 = vrot.lane.b32.xlu0 %v1454, 112
    %v1462 = vpop.permute.xlu0 %1461
    %1463 = vrot.lane.b32.xlu0 %v1455, 112
    %v1464 = vpop.permute.xlu0 %1463
    %v1465 = vsel %vm198, %v1460, %v1462
    %v1466 = vsel %vm198, %v1462, %v1464
    %1469 = vst [vmem:[#allocation8 + $0xb0] sm:$0xff] %v1465
    %1470 = vst [vmem:[#allocation8 + $0xb8] sm:$0xff] %v1466
    %v1471 = vld [vmem:[#allocation3] sm:$0xff]
    %v1472 = vld [vmem:[#allocation3 + $0x8] sm:$0xff]
    %v1473 = vld [vmem:[#allocation3 + $0x10] sm:$0xff]
    %1477 = vrot.lane.b32.xlu0 %v1471, 111
    %v1478 = vpop.permute.xlu0 %1477
    %1479 = vrot.lane.b32.xlu0 %v1472, 111
    %v1480 = vpop.permute.xlu0 %1479
    %1481 = vrot.lane.b32.xlu0 %v1473, 111
    %v1482 = vpop.permute.xlu0 %1481
    %v1483 = vsel %vm216, %v1478, %v1480
    %v1484 = vsel %vm216, %v1480, %v1482
    %1487 = vst [vmem:[#allocation8 + $0xe0] sm:$0xff] %v1483
    %1488 = vst [vmem:[#allocation8 + $0xe8] sm:$0xff] %v1484
    %v1489 = vld [vmem:[#allocation3] sm:$0xff]
    %v1490 = vld [vmem:[#allocation3 + $0x8] sm:$0xff]
    %v1491 = vld [vmem:[#allocation3 + $0x10] sm:$0xff]
    %v1492 = vld [vmem:[%s129] ss:$2 sm:$0x3]
    %v1494 = vlaneseq
    %v1495 = vshrl.u32 %v1494, 7
    %v1496 = vsub.s32 0, %v1495
    %v1497 = vrot.slane %v1492, %v1496
    %v1498 = vlaneseq
    %v1499 = vshrl.u32 %v1498, 7
    %v1500 = vsub.s32 1, %v1499
    %v1501 = vrot.slane %v1492, %v1500
    %1502 = vrot.lane.b32.xlu0 %v1497, 18
    %v1503 = vpop.permute.xlu0 %1502
    %1504 = vrot.lane.b32.xlu0 %v1501, 18
    %v1505 = vpop.permute.xlu0 %1504
    %v1506 = vsel %vm239, %v1503, %v1505
    %v1510 = vmul.f32 %v1489, %v1503
    %v1511 = vmul.f32 %v1490, %v1506
    %v1512 = vmul.f32 %v1491, %v1505
    %1516 = vrot.lane.b32.xlu0 %v1510, 110
    %v1517 = vpop.permute.xlu0 %1516
    %1518 = vrot.lane.b32.xlu0 %v1511, 110
    %v1519 = vpop.permute.xlu0 %1518
    %1520 = vrot.lane.b32.xlu0 %v1512, 110
    %v1521 = vpop.permute.xlu0 %1520
    %v1522 = vsel %vm255, %v1517, %v1519
    %v1523 = vsel %vm255, %v1519, %v1521
    %1526 = vst [vmem:[#allocation8 + $0x110] sm:$0xff] %v1522
    %1527 = vst [vmem:[#allocation8 + $0x118] sm:$0xff] %v1523
    %v1528 = vld [vmem:[#allocation3] sm:$0xff]
    %v1529 = vld [vmem:[#allocation3 + $0x8] sm:$0xff]
    %v1530 = vld [vmem:[#allocation3 + $0x10] sm:$0xff]
    %v1531 = vld [vmem:[%s1] ss:$2 sm:$0x3]
    %v1533 = vlaneseq
    %v1534 = vshrl.u32 %v1533, 7
    %v1535 = vsub.s32 0, %v1534
    %v1536 = vrot.slane %v1531, %v1535
    %v1537 = vlaneseq
    %v1538 = vshrl.u32 %v1537, 7
    %v1539 = vsub.s32 1, %v1538
    %v1540 = vrot.slane %v1531, %v1539
    %1541 = vrot.lane.b32.xlu0 %v1536, 32
    %v1542 = vpop.permute.xlu0 %1541
    %1543 = vrot.lane.b32.xlu0 %v1540, 32
    %v1544 = vpop.permute.xlu0 %1543
    %v1545 = vsel %vm278, %v1542, %v1544
    %v1549 = vmul.f32 %v1528, %v1542
    %v1550 = vmul.f32 %v1529, %v1545
    %v1551 = vmul.f32 %v1530, %v1544
    %1555 = vrot.lane.b32.xlu0 %v1549, 96
    %v1556 = vpop.permute.xlu0 %1555
    %1557 = vrot.lane.b32.xlu0 %v1550, 96
    %v1558 = vpop.permute.xlu0 %1557
    %1559 = vrot.lane.b32.xlu0 %v1551, 96
    %v1560 = vpop.permute.xlu0 %1559
    %v1561 = vsel %vm293, %v1556, %v1558
    %v1562 = vsel %vm293, %v1558, %v1560
    %1565 = vst [vmem:[#allocation8 + $0x140] sm:$0xff] %v1561
    %1566 = vst [vmem:[#allocation8 + $0x148] sm:$0xff] %v1562
    %v1567 = vld [vmem:[#allocation3] sm:$0xff]
    %v1568 = vld [vmem:[#allocation3 + $0x8] sm:$0xff]
    %v1569 = vld [vmem:[#allocation3 + $0x10] sm:$0xff]
    %1573 = vrot.lane.b32.xlu0 %v1567, 95
    %v1574 = vpop.permute.xlu0 %1573
    %1575 = vrot.lane.b32.xlu0 %v1568, 95
    %v1576 = vpop.permute.xlu0 %1575
    %1577 = vrot.lane.b32.xlu0 %v1569, 95
    %v1578 = vpop.permute.xlu0 %1577
    %v1579 = vsel %vm312, %v1574, %v1576
    %v1580 = vsel %vm312, %v1576, %v1578
    %1583 = vst [vmem:[#allocation8 + $0x170] sm:$0xff] %v1579
    %1584 = vst [vmem:[#allocation8 + $0x178] sm:$0xff] %v1580
    %v1585 = vld [vmem:[#allocation3] sm:$0xff]
    %v1586 = vld [vmem:[#allocation3 + $0x8] sm:$0xff]
    %v1587 = vld [vmem:[#allocation3 + $0x10] sm:$0xff]
    %v1588 = vld [vmem:[%s129] ss:$2 sm:$0x3]
    %v1590 = vlaneseq
    %v1591 = vshrl.u32 %v1590, 7
    %v1592 = vsub.s32 0, %v1591
    %v1593 = vrot.slane %v1588, %v1592
    %v1594 = vlaneseq
    %v1595 = vshrl.u32 %v1594, 7
    %v1596 = vsub.s32 1, %v1595
    %v1597 = vrot.slane %v1588, %v1596
    %1598 = vrot.lane.b32.xlu0 %v1593, 34
    %v1599 = vpop.permute.xlu0 %1598
    %1600 = vrot.lane.b32.xlu0 %v1597, 34
    %v1601 = vpop.permute.xlu0 %1600
    %v1602 = vsel %vm335, %v1599, %v1601
    %v1606 = vmul.f32 %v1585, %v1599
    %v1607 = vmul.f32 %v1586, %v1602
    %v1608 = vmul.f32 %v1587, %v1601
    %1612 = vrot.lane.b32.xlu0 %v1606, 94
    %v1613 = vpop.permute.xlu0 %1612
    %1614 = vrot.lane.b32.xlu0 %v1607, 94
    %v1615 = vpop.permute.xlu0 %1614
    %1616 = vrot.lane.b32.xlu0 %v1608, 94
    %v1617 = vpop.permute.xlu0 %1616
    %v1618 = vsel %vm350, %v1613, %v1615
    %v1619 = vsel %vm350, %v1615, %v1617
    %1622 = vst [vmem:[#allocation8 + $0x1a0] sm:$0xff] %v1618
    %1623 = vst [vmem:[#allocation8 + $0x1a8] sm:$0xff] %v1619
    %v1624 = vld [vmem:[%s9] sm:$0xff]
    %v1625 = vld [vmem:[#allocation8] sm:$0xff]
    %v1626 = vld [vmem:[#allocation8 + $0x8] sm:$0xff]
    %v1627 = vld [vmem:[#allocation8 + $0x10] sm:$0xff]
    %v1628 = vld [vmem:[#allocation8 + $0x18] sm:$0xff]
    %v1629 = vld [vmem:[#allocation8 + $0x20] sm:$0xff]
    %v1630 = vld [vmem:[#allocation8 + $0x28] sm:$0xff]
    %v1631 = vld [vmem:[#allocation8 + $0x30] sm:$0xff]
    %v1632 = vld [vmem:[#allocation8 + $0x38] sm:$0xff]
    %v1633 = vld [vmem:[#allocation8 + $0x40] sm:$0xff]
    %v1634 = vld [vmem:[#allocation8 + $0x48] sm:$0xff]
    %v1635 = vld [vmem:[#allocation8 + $0x50] sm:$0xff]
    %v1636 = vld [vmem:[#allocation8 + $0x58] sm:$0xff]
    %v1637 = vld [vmem:[#allocation8 + $0x60] sm:$0xff]
    %v1638 = vld [vmem:[#allocation8 + $0x68] sm:$0xff]
    %v1639 = vld [vmem:[#allocation8 + $0x70] sm:$0xff]
    %v1640 = vld [vmem:[#allocation8 + $0x78] sm:$0xff]
    %v1641 = vld [vmem:[#allocation8 + $0x80] sm:$0xff]
    %v1642 = vld [vmem:[#allocation8 + $0x88] sm:$0xff]
    %v1643 = vld [vmem:[#allocation8 + $0x90] sm:$0xff]
    %v1644 = vld [vmem:[#allocation8 + $0x98] sm:$0xff]
    %v1645 = vld [vmem:[#allocation8 + $0xa0] sm:$0xff]
    %v1646 = vld [vmem:[#allocation8 + $0xa8] sm:$0xff]
    %v1647 = vld [vmem:[#allocation8 + $0xb0] sm:$0xff]
    %v1648 = vld [vmem:[#allocation8 + $0xb8] sm:$0xff]
    %v1649 = vld [vmem:[#allocation8 + $0xc0] sm:$0xff]
    %v1650 = vld [vmem:[#allocation8 + $0xc8] sm:$0xff]
    %v1651 = vld [vmem:[#allocation8 + $0xd0] sm:$0xff]
    %v1652 = vld [vmem:[#allocation8 + $0xd8] sm:$0xff]
    %v1653 = vld [vmem:[#allocation8 + $0xe0] sm:$0xff]
    %v1654 = vld [vmem:[#allocation8 + $0xe8] sm:$0xff]
    %v1655 = vld [vmem:[#allocation8 + $0xf0] sm:$0xff]
    %v1656 = vld [vmem:[#allocation8 + $0xf8] sm:$0xff]
    %v1657 = vld [vmem:[#allocation8 + $0x100] sm:$0xff]
    %v1658 = vld [vmem:[#allocation8 + $0x108] sm:$0xff]
    %v1659 = vld [vmem:[#allocation8 + $0x110] sm:$0xff]
    %v1660 = vld [vmem:[#allocation8 + $0x118] sm:$0xff]
    %v1661 = vld [vmem:[#allocation8 + $0x120] sm:$0xff]
    %v1662 = vld [vmem:[#allocation8 + $0x128] sm:$0xff]
    %v1663 = vld [vmem:[#allocation8 + $0x130] sm:$0xff]
    %v1664 = vld [vmem:[#allocation8 + $0x138] sm:$0xff]
    %v1665 = vld [vmem:[#allocation8 + $0x140] sm:$0xff]
    %v1666 = vld [vmem:[#allocation8 + $0x148] sm:$0xff]
    %v1667 = vld [vmem:[#allocation8 + $0x150] sm:$0xff]
    %v1668 = vld [vmem:[#allocation8 + $0x158] sm:$0xff]
    %v1669 = vld [vmem:[#allocation8 + $0x160] sm:$0xff]
    %v1670 = vld [vmem:[#allocation8 + $0x168] sm:$0xff]
    %v1671 = vld [vmem:[#allocation8 + $0x170] sm:$0xff]
    %v1672 = vld [vmem:[#allocation8 + $0x178] sm:$0xff]
    %v1673 = vld [vmem:[#allocation8 + $0x180] sm:$0xff]
    %v1674 = vld [vmem:[#allocation8 + $0x188] sm:$0xff]
    %v1675 = vld [vmem:[#allocation8 + $0x190] sm:$0xff]
    %v1676 = vld [vmem:[#allocation8 + $0x198] sm:$0xff]
    %v1677 = vld [vmem:[#allocation8 + $0x1a0] sm:$0xff]
    %v1678 = vld [vmem:[#allocation8 + $0x1a8] sm:$0xff]
    %v1679 = vpack.c.bf16 %v1627, %v1625
    %v1680 = vpack.c.bf16 %v1628, %v1626
    %v1681 = vpack.c.bf16 %v1631, %v1629
    %v1682 = vpack.c.bf16 %v1632, %v1630
    %v1683 = vpack.c.bf16 %v1635, %v1633
    %v1684 = vpack.c.bf16 %v1636, %v1634
    %v1685 = vpack.c.bf16 %v1639, %v1637
    %v1686 = vpack.c.bf16 %v1640, %v1638
    %v1687 = vpack.c.bf16 %v1643, %v1641
    %v1688 = vpack.c.bf16 %v1644, %v1642
    %v1689 = vpack.c.bf16 %v1647, %v1645
    %v1690 = vpack.c.bf16 %v1648, %v1646
    %v1691 = vpack.c.bf16 %v1651, %v1649
    %v1692 = vpack.c.bf16 %v1652, %v1650
    %v1693 = vpack.c.bf16 %v1655, %v1653
    %v1694 = vpack.c.bf16 %v1656, %v1654
    %v1695 = vpack.c.bf16 %v1659, %v1657
    %v1696 = vpack.c.bf16 %v1660, %v1658
    %v1697 = vpack.c.bf16 %v1663, %v1661
    %v1698 = vpack.c.bf16 %v1664, %v1662
    %v1699 = vpack.c.bf16 %v1667, %v1665
    %v1700 = vpack.c.bf16 %v1668, %v1666
    %v1701 = vpack.c.bf16 %v1671, %v1669
    %v1702 = vpack.c.bf16 %v1672, %v1670
    %v1703 = vpack.c.bf16 %v1675, %v1673
    %v1704 = vpack.c.bf16 %v1676, %v1674
    %v1705 = vpack.c.bf16 %v1677, %v1677
    %v1706 = vpack.c.bf16 %v1678, %v1678
    %v1707 = vld [vmem:[%s10] sm:$0xff]
    %1709 = vset.pattern.permute.xlu0 0
    %1710 = vperm.xlu0 %1709, %v1707
    %v1711 = vpop.permute.xlu0 %1710
    %v1714 = vunpack.c.l.b16 %v1624
    %v1715 = vunpack.c.h.b16 %v1624
    %v1716 = vpack.c.b16 %v1714, %v1714
    %v1717 = vpack.c.b16 %v1715, %v1715
    %vm1719 = vcmask 719872
    %v1721 = vsel %vm1719, %v1717, 0
    %v1724 = vsel %vm749, %v1705, 0
    %v1727 = vsel %vm749, %v1706, 0
    %1729 = vmatprep.subr.bf16.mxu0 %v1680
    %1730 = vmatpush1.bf16.msra.mxu0 %v1679
    %1731 = vmatprep.subr.bf16.mxu0 %v1682
    %1732 = vmatpush1.bf16.msra.mxu0 %v1681
    %1733 = vmatprep.subr.bf16.mxu0 %v1684
    %1734 = vmatpush1.bf16.msra.mxu0 %v1683
    %1735 = vmatprep.subr.bf16.mxu0 %v1686
    %1736 = vmatpush1.bf16.msra.mxu0 %v1685
    %1737 = vmatprep.subr.bf16.mxu0 %v1688
    %1738 = vmatpush1.bf16.msra.mxu0 %v1687
    %1739 = vmatprep.subr.bf16.mxu0 %v1690
    %1740 = vmatpush1.bf16.msra.mxu0 %v1689
    %1741 = vmatprep.subr.bf16.mxu0 %v1692
    %1742 = vmatpush1.bf16.msra.mxu0 %v1691
    %1743 = vmatprep.subr.bf16.mxu0 %v1694
    %1744 = vmatpush1.bf16.msra.mxu0 %v1693
    %1745 = vmatprep.subr.bf16.mxu0 %v1696
    %1746 = vmatpush1.bf16.msra.mxu0 %v1695
    %1747 = vmatprep.subr.bf16.mxu0 %v1698
    %1748 = vmatpush1.bf16.msra.mxu0 %v1697
    %1749 = vmatprep.subr.bf16.mxu0 %v1700
    %1750 = vmatpush1.bf16.msra.mxu0 %v1699
    %1751 = vmatprep.subr.bf16.mxu0 %v1702
    %1752 = vmatpush1.bf16.msra.mxu0 %v1701
    %1753 = vmatprep.subr.bf16.mxu0 %v1704
    %1754 = vmatpush1.bf16.msra.mxu0 %v1703
    %1755 = vmatprep.subr.bf16.mxu0 %v1727
    %1756 = vmatpush1.bf16.msra.mxu0 %v1724
    %1757 = vmatprep.subr.bf16.mxu0 0
    %1758 = vmatpush1.bf16.msra.mxu0 0
    %1759 = vmatprep.subr.bf16.mxu0 0
    %1760 = vmatpush1.bf16.msra.mxu0 0
    %1761 = vmatprep.mubr.bf16.mxu0 %v1721
    %1762 = vmatmul.mubr.bf16.gmra.mrb[0].mxu0 %v1716
    %v1763 = vpop.f32.mrb[0].mxu0
    %v1764 = vadd.f32 %v1711, %v1763
    %v1765 = vpop.f32.mrb[0].mxu0
    %v1766 = vadd.f32 %v1711, %v1765
    %v1767 = vpop.f32.mrb[0].mxu0
    %v1768 = vpop.f32.mrb[0].mxu0
    %1769 = vdwg.mxu0
    %v1770 = vmax.f32 %v1764, 0.0
    %v1771 = vmax.f32 %v1766, 0.0
    %v1772 = vld [vmem:[%s11] sm:$0x7]
    %v1773 = vld [vmem:[%s12] sm:$0x7]
    %1775 = vset.pattern.permute.xlu0 0
    %1776 = vperm.xlu0 %1775, %v1773
    %v1777 = vpop.permute.xlu0 %1776
    %vm1779 = vcmask 64512
    %v1781 = vsel %vm1779, %v1772, 0
    %1783 = vmatprep.subr.mxu0 %v1771
    %1784 = vmatpush1.msra.mxu0 %v1770
    %1785 = vmatprep.subr.mxu0 0.0
    %1786 = vmatpush1.msra.mxu0 0.0
    %1787 = vmatprep.subr.mxu0 0.0
    %1788 = vmatpush1.msra.mxu0 0.0
    %1789 = vmatprep.subr.mxu0 0.0
    %1790 = vmatpush1.msra.mxu0 0.0
    %1791 = vmatprep.subr.mxu0 0.0
    %1792 = vmatpush1.msra.mxu0 0.0
    %1793 = vmatprep.subr.mxu0 0.0
    %1794 = vmatpush1.msra.mxu0 0.0
    %1795 = vmatprep.subr.mxu0 0.0
    %1796 = vmatpush1.msra.mxu0 0.0
    %1797 = vmatprep.subr.mxu0 0.0
    %1798 = vmatpush1.msra.mxu0 0.0
    %1799 = vmatprep.subr.mxu0 0.0
    %1800 = vmatpush1.msra.mxu0 0.0
    %1801 = vmatprep.subr.mxu0 0.0
    %1802 = vmatpush1.msra.mxu0 0.0
    %1803 = vmatprep.subr.mxu0 0.0
    %1804 = vmatpush1.msra.mxu0 0.0
    %1805 = vmatprep.subr.mxu0 0.0
    %1806 = vmatpush1.msra.mxu0 0.0
    %1807 = vmatprep.subr.mxu0 0.0
    %1808 = vmatpush1.msra.mxu0 0.0
    %1809 = vmatprep.subr.mxu0 0.0
    %1810 = vmatpush1.msra.mxu0 0.0
    %1811 = vmatprep.subr.mxu0 0.0
    %1812 = vmatpush1.msra.mxu0 0.0
    %1813 = vmatprep.subr.mxu0 0.0
    %1814 = vmatpush1.msra.mxu0 0.0
    %1815 = vmatprep.subr.mxu0 0.0
    %1816 = vmatpush1.msra.mxu0 0.0
    %1817 = vmatprep.subr.mxu0 0.0
    %1818 = vmatpush1.msra.mxu0 0.0
    %1819 = vmatprep.subr.mxu0 0.0
    %1820 = vmatpush1.msra.mxu0 0.0
    %1821 = vmatprep.subr.mxu0 0.0
    %1822 = vmatpush1.msra.mxu0 0.0
    %1823 = vmatprep.subr.mxu0 0.0
    %1824 = vmatpush1.msra.mxu0 0.0
    %1825 = vmatprep.subr.mxu0 0.0
    %1826 = vmatpush1.msra.mxu0 0.0
    %1827 = vmatprep.subr.mxu0 0.0
    %1828 = vmatpush1.msra.mxu0 0.0
    %1829 = vmatprep.subr.mxu0 0.0
    %1830 = vmatpush1.msra.mxu0 0.0
    %1831 = vmatprep.subr.mxu0 0.0
    %1832 = vmatpush1.msra.mxu0 0.0
    %1833 = vmatprep.subr.mxu0 0.0
    %1834 = vmatpush1.msra.mxu0 0.0
    %1835 = vmatprep.subr.mxu0 0.0
    %1836 = vmatpush1.msra.mxu0 0.0
    %1837 = vmatprep.subr.mxu0 0.0
    %1838 = vmatpush1.msra.mxu0 0.0
    %1839 = vmatprep.subr.mxu0 0.0
    %1840 = vmatpush1.msra.mxu0 0.0
    %1841 = vmatprep.subr.mxu0 0.0
    %1842 = vmatpush1.msra.mxu0 0.0
    %1843 = vmatprep.subr.mxu0 0.0
    %1844 = vmatpush1.msra.mxu0 0.0
    %1845 = vmatprep.subr.mxu0 0.0
    %1846 = vmatpush1.msra.mxu0 0.0
    %1847 = vmatprep.mubr.f32.mxu0 0.0
    %1848 = vmatmul.mubr.f32.gmra.mrb[0].mxu0 %v1781
    %v1849 = vpop.f32.mrb[0].mxu0
    %v1850 = vadd.f32 %v1777, %v1849
    %v1851 = vpop.f32.mrb[0].mxu0
    %v1852 = vadd.f32 %v1777, %v1851
    %1853 = vdwg.mxu0
    %v1856 = vrot.slane %v1850, 7
    %v1857 = vrot.slane %v1852, 7
    %vm1860 = vcmp.gt.f32.partialorder %v1850, %v1856
    %vm1861 = vcmp.gt.f32.partialorder %v1852, %v1857
    %v1862 = vsel %vm1860, 1, 0
    %v1863 = vsel %vm1861, 1, 0
    %v1864 = vsel %vm1860, %v1850, %v1856
    %v1865 = vsel %vm1861, %v1852, %v1857
    %v1868 = vrot.slane %v1864, 7
    %v1869 = vrot.slane %v1865, 7
    %vm1872 = vcmp.gt.f32.partialorder %v1850, %v1868
    %vm1873 = vcmp.gt.f32.partialorder %v1852, %v1869
    %v1874 = vrot.slane %v1862, 7
    %v1875 = vrot.slane %v1863, 7
    %v1876 = vsel %vm1872, 2, %v1874
    %v1877 = vsel %vm1873, 2, %v1875
    %v1878 = vcombine.low %v1876, %v1877
    %v1880 = vunpack.c.l.s4 1966171168
    %v1881 = vunpack.c.0.s8 %v1880
    %v1882 = vlaneseq
    %v1883 = vshrl.u32 %v1882, 7
    %v1884 = vsub.s32 %v1881, %v1883
    %v1885 = vrot.slane %v1878, %v1884
    %v1887 = vunpack.c.l.s4 1966171168
    %v1888 = vunpack.c.0.s8 %v1887
    %v1889 = vlaneseq
    %v1890 = vshrl.u32 %v1889, 7
    %v1891 = vsub.s32 %v1888, %v1890
    %v1892 = vrot.slane %v1885, %v1891
    %v1893 = vcombine.high %v1892, %v1892
    %v1894 = vlaneseq
    %vm1895 = vcmp.ge.s32.totalorder %v1894, 0
    %vm1896 = vcmp.lt.s32.totalorder %v1894, 256
    %vm1897 = vmand %vm1895, %vm1896
    %1898 = vst.msk [vmem:[%s13] sm:$0x3] %vm1897, %v1893
    // Predicated region
    $region62: #{ttuseg_forward.1} parent=1 // pred_check
      _
    $region63: #{ttuseg_forward.1} parent=1 // pred_check_branch
      %1900 = sbr.rel (0) target = $region65
    $region64: #{ttuseg_forward.1} parent=1 // pred_region
      _
    $region65: #{ttuseg_forward.1} parent=1 // pred_fallthru
      _
    // Predicated region
    $region66: #{ttuseg_forward.1} parent=1 // pred_check
      _
    $region67: #{ttuseg_forward.1} parent=1 // pred_check_branch
      %1902 = sbr.rel (0) target = $region69
    $region68: #{ttuseg_forward.1} parent=1 // pred_region
      _
    $region69: #{ttuseg_forward.1} parent=1 // pred_fallthru
      _
    %1903 = vsyncpa [#allocation10], 1
    %1904 = vsyncpa [#allocation12], 1

</llo_original>
